<compile_context>
chip_gen: v5e
topology: v5e:2x2
jax: 0.10.0
libtpu: 0.0.40
codegen_flags: <defaults>
</compile_context>

<pallas_src>
import functools

import jax
import jax.numpy as jnp
from jax.experimental import pallas as pl
from jax.experimental.pallas import tpu as pltpu


def _mish_f32(v):
    # Mish(x) = x * tanh(softplus(x)) = x * ((1+e^x)^2 - 1) / ((1+e^x)^2 + 1)
    # Single transcendental (exp). The n/(n+2) form avoids cancellation for negative x;
    # the jnp.where guards the inf/inf case once e^2 overflows f32 (x > ~44).
    e = jnp.exp(v)
    n = e * (e + 2.0)                                   # (1+e)^2 - 1
    t = n * pl.reciprocal(n + 2.0, approx=False)        # exact: keeps ~1e-6 accuracy
    t = jnp.where(v > 30.0, 1.0, t)                     # mish(x) == x there in f32
    return v * t


def accel_mlp_kernel(x_ref,
                     w1_ref, b1_ref,
                     w2_ref, b2_ref,
                     w3_ref, b3_ref,
                     w4_ref, b4_ref,
                     o_ref):
    mm_dtype = w1_ref.dtype            # matmul-operand dtype (bf16 fast path or f32)
    x = x_ref[...].astype(mm_dtype)

    # TODO(synk): nn.Dropout(0.5) in training mode would randomly zero + rescale;
    # implemented here with eval/inference semantics (identity).
    h = _mish_f32(jnp.dot(x, w1_ref[...],
                          preferred_element_type=jnp.float32) + b1_ref[...])
    h = _mish_f32(jnp.dot(h.astype(mm_dtype), w2_ref[...],
                          preferred_element_type=jnp.float32) + b2_ref[...])
    h = _mish_f32(jnp.dot(h.astype(mm_dtype), w3_ref[...],
                          preferred_element_type=jnp.float32) + b3_ref[...])
    h = jnp.dot(h.astype(mm_dtype), w4_ref[...],
                preferred_element_type=jnp.float32) + b4_ref[...]
    o_ref[...] = jnp.tanh(h).astype(o_ref.dtype)


def _round_up(n, m):
    return (n + m - 1) // m * m


def acceleration_network_forward(x, params, *, tile_b=128,
                                 matmul_dtype=jnp.bfloat16):
    """x: [B, input_size] float32. params: dict of (w1,b1,...,w4,b4) float32."""
    B, in_features = x.shape

    # Batch tile: multiple of 8 sublanes (default a full 128 MXU rows); never larger
    # than the 8-rounded batch so tiny batches don't carry a huge partial block.
    tile = max(8, min(_round_up(tile_b, 8), _round_up(B, 8)))
    grid = (pl.cdiv(B, tile),)

    # Matmul operands in bf16 (native MXU input on v6e/v7x, fine on v5e's MXU too);
    # biases and all elementwise math stay f32 (v5e VPU/EUP have no bf16 path).
    w1 = params["w1"].astype(matmul_dtype)
    w2 = params["w2"].astype(matmul_dtype)
    w3 = params["w3"].astype(matmul_dtype)
    w4 = params["w4"].astype(matmul_dtype)
    b1, b2, b3, b4 = params["b1"], params["b2"], params["b3"], params["b4"]
    out_size = w4.shape[1]

    def full_spec(arr):
        # Whole (small) parameter array resident in VMEM; same block every grid step.
        return pl.BlockSpec(arr.shape, lambda i: (0,) * arr.ndim)

    # NOTE: hidden-3 (64) / output (4) lane dims are intentionally NOT padded to 128:
    # padding would add wasted Mish EUP work and extra HBM output traffic that outweighs
    # the masked-store saving for these tiny dims.
    return pl.pallas_call(
        accel_mlp_kernel,
        out_shape=jax.ShapeDtypeStruct((B, out_size), jnp.float32),
        grid_spec=pltpu.PrefetchScalarGridSpec(
            num_scalar_prefetch=0,
            grid=grid,
            in_specs=[
                pl.BlockSpec((tile, in_features), lambda i: (i, 0)),
                full_spec(w1), full_spec(b1),
                full_spec(w2), full_spec(b2),
                full_spec(w3), full_spec(b3),
                full_spec(w4), full_spec(b4),
            ],
            out_specs=pl.BlockSpec((tile, out_size), lambda i: (i, 0)),
        ),
        # Batch axis is embarrassingly parallel -> shards across both v7x TensorCores
        # when the grid has >=2 steps. Per-step VMEM (<1 MiB) is far below every
        # generation's scoped limit, so no vmem_limit_bytes override is needed.
        compiler_params=pltpu.CompilerParams(
            dimension_semantics=("parallel",)),
    )(x, w1, b1, w2, b2, w3, b3, w4, b4)


def init_params(key, input_size, output_size, size=256):
    """Deterministic init mimicking nn.Linear default (uniform(-1/sqrt(in), 1/sqrt(in)))."""
    dims = [(input_size, size), (size, size // 2), (size // 2, size // 4),
            (size // 4, output_size)]
    params = {}
    for idx, (fan_in, fan_out) in enumerate(dims, start=1):
        key, kw, kb = jax.random.split(key, 3)
        bound = 1.0 / jnp.sqrt(jnp.float32(fan_in))
        params[f"w{idx}"] = jax.random.uniform(
            kw, (fan_in, fan_out), jnp.float32, -bound, bound)
        # bias kept 2D [1, out] for TPU-friendly layout; broadcasts over batch.
        params[f"b{idx}"] = jax.random.uniform(
            kb, (1, fan_out), jnp.float32, -bound, bound)
    return params


def reference_forward(x, params):
    """Pure-JAX f32 reference for sanity checking."""
    def mish(v):
        return v * jnp.tanh(jax.nn.softplus(v))
    h = mish(x @ params["w1"] + params["b1"])
    h = mish(h @ params["w2"] + params["b2"])
    h = mish(h @ params["w3"] + params["b3"])
    return jnp.tanh(h @ params["w4"] + params["b4"])


if __name__ == "__main__":
    input_size = 32
    output_size = 4
    size = 256
    batch = 200   # not a multiple of the 128-row tile: exercises the ragged last block
                  # and gives a 2-step "parallel" grid (both v7x TensorCores busy).

    key = jax.random.PRNGKey(0)
    key, kx = jax.random.split(key)
    x = jax.random.normal(kx, (batch, input_size), jnp.float32)
    params = init_params(key, input_size, output_size, size=size)

    y_ref = reference_forward(x, params)

    # f32-operand path: near-exact vs the pure-JAX reference.
    fwd_f32 = jax.jit(functools.partial(acceleration_network_forward,
                                        tile_b=128, matmul_dtype=jnp.float32))
    y32 = fwd_f32(x, params)
    jax.block_until_ready(y32)
    assert y32.shape == (batch, output_size)
    assert jnp.max(jnp.abs(y32 - y_ref)) < 1e-4, "f32 mismatch vs reference"

    # bf16-operand fast path (default): f32 accumulation, looser tolerance.
    fwd_bf16 = jax.jit(functools.partial(acceleration_network_forward, tile_b=128))
    y16 = fwd_bf16(x, params)
    jax.block_until_ready(y16)
    assert y16.shape == (batch, output_size)
    assert jnp.max(jnp.abs(y16 - y_ref)) < 5e-2, "bf16 mismatch vs reference"

    print("KERNEL_OK")
</pallas_src>

<mosaic_0001>
module attributes {stable_mosaic.version = 11 : i64} {
  func.func @accel_mlp_kernel(%arg0: i32, %arg1: memref<128x32xf32, #tpu.memory_space<vmem>>, %arg2: memref<32x256xf32, #tpu.memory_space<vmem>>, %arg3: memref<1x256xf32, #tpu.memory_space<vmem>>, %arg4: memref<256x128xf32, #tpu.memory_space<vmem>>, %arg5: memref<1x128xf32, #tpu.memory_space<vmem>>, %arg6: memref<128x64xf32, #tpu.memory_space<vmem>>, %arg7: memref<1x64xf32, #tpu.memory_space<vmem>>, %arg8: memref<64x4xf32, #tpu.memory_space<vmem>>, %arg9: memref<1x4xf32, #tpu.memory_space<vmem>>, %arg10: memref<128x4xf32, #tpu.memory_space<vmem>>) attributes {dimension_semantics = [#tpu.dimension_semantics<parallel>], iteration_bounds = array<i64: 2>, scalar_prefetch = 0 : i64, scratch_operands = 0 : i64, tpu.core_type = #tpu.core_type<tc>, window_params = [{transform_indices = @transform_0, window_bounds = array<i64: 128, 32>}, {pipeline_mode = #tpu.pipeline_mode<synchronous>, transform_indices = @transform_1, window_bounds = array<i64: 32, 256>}, {pipeline_mode = #tpu.pipeline_mode<synchronous>, transform_indices = @transform_2, window_bounds = array<i64: 1, 256>}, {pipeline_mode = #tpu.pipeline_mode<synchronous>, transform_indices = @transform_3, window_bounds = array<i64: 256, 128>}, {pipeline_mode = #tpu.pipeline_mode<synchronous>, transform_indices = @transform_4, window_bounds = array<i64: 1, 128>}, {pipeline_mode = #tpu.pipeline_mode<synchronous>, transform_indices = @transform_5, window_bounds = array<i64: 128, 64>}, {pipeline_mode = #tpu.pipeline_mode<synchronous>, transform_indices = @transform_6, window_bounds = array<i64: 1, 64>}, {pipeline_mode = #tpu.pipeline_mode<synchronous>, transform_indices = @transform_7, window_bounds = array<i64: 64, 4>}, {pipeline_mode = #tpu.pipeline_mode<synchronous>, transform_indices = @transform_8, window_bounds = array<i64: 1, 4>}, {transform_indices = @transform_9, window_bounds = array<i64: 128, 4>}]} {
    %c0 = arith.constant 0 : index
    %c0_0 = arith.constant 0 : index
    %0 = vector.load %arg1[%c0, %c0_0] : memref<128x32xf32, #tpu.memory_space<vmem>>, vector<128x32xf32>
    %c0_1 = arith.constant 0 : index
    %c0_2 = arith.constant 0 : index
    %1 = vector.load %arg2[%c0_1, %c0_2] : memref<32x256xf32, #tpu.memory_space<vmem>>, vector<32x256xf32>
    %cst = arith.constant dense<0.000000e+00> : vector<128x256xf32>
    %2 = tpu.matmul %0, %1, %cst {dimension_numbers = #tpu.dot_dimension_numbers<[1], [0], [0], [1], [0, 0, 1, 1], [], []>} : vector<128x32xf32>, vector<32x256xf32>, vector<128x256xf32> -> vector<128x256xf32>
    %c0_3 = arith.constant 0 : index
    %c0_4 = arith.constant 0 : index
    %3 = vector.load %arg3[%c0_3, %c0_4] : memref<1x256xf32, #tpu.memory_space<vmem>>, vector<1x256xf32>
    %4 = vector.broadcast %3 : vector<1x256xf32> to vector<128x256xf32>
    %5 = arith.addf %2, %4 : vector<128x256xf32>
    %6 = math.exp %5 : vector<128x256xf32>
    %cst_5 = arith.constant 2.000000e+00 : f32
    %7 = vector.broadcast %cst_5 : f32 to vector<128x256xf32>
    %8 = arith.addf %6, %7 : vector<128x256xf32>
    %9 = arith.mulf %6, %8 : vector<128x256xf32>
    %cst_6 = arith.constant 2.000000e+00 : f32
    %10 = vector.broadcast %cst_6 : f32 to vector<128x256xf32>
    %11 = arith.addf %9, %10 : vector<128x256xf32>
    %12 = tpu.reciprocal %11 : vector<128x256xf32> -> vector<128x256xf32>
    %13 = arith.mulf %9, %12 : vector<128x256xf32>
    %cst_7 = arith.constant 3.000000e+01 : f32
    %14 = vector.broadcast %cst_7 : f32 to vector<128x256xf32>
    %15 = arith.cmpf ogt, %5, %14 : vector<128x256xf32>
    %cst_8 = arith.constant 1.000000e+00 : f32
    %16 = vector.broadcast %cst_8 : f32 to vector<128x256xf32>
    %17 = arith.select %15, %16, %13 : vector<128x256xi1>, vector<128x256xf32>
    %18 = arith.mulf %5, %17 : vector<128x256xf32>
    %c0_9 = arith.constant 0 : index
    %c0_10 = arith.constant 0 : index
    %19 = vector.load %arg4[%c0_9, %c0_10] : memref<256x128xf32, #tpu.memory_space<vmem>>, vector<256x128xf32>
    %cst_11 = arith.constant dense<0.000000e+00> : vector<128x128xf32>
    %20 = tpu.matmul %18, %19, %cst_11 {dimension_numbers = #tpu.dot_dimension_numbers<[1], [0], [0], [1], [0, 0, 1, 1], [], []>} : vector<128x256xf32>, vector<256x128xf32>, vector<128x128xf32> -> vector<128x128xf32>
    %c0_12 = arith.constant 0 : index
    %c0_13 = arith.constant 0 : index
    %21 = vector.load %arg5[%c0_12, %c0_13] : memref<1x128xf32, #tpu.memory_space<vmem>>, vector<1x128xf32>
    %22 = vector.broadcast %21 : vector<1x128xf32> to vector<128x128xf32>
    %23 = arith.addf %20, %22 : vector<128x128xf32>
    %24 = math.exp %23 : vector<128x128xf32>
    %cst_14 = arith.constant 2.000000e+00 : f32
    %25 = vector.broadcast %cst_14 : f32 to vector<128x128xf32>
    %26 = arith.addf %24, %25 : vector<128x128xf32>
    %27 = arith.mulf %24, %26 : vector<128x128xf32>
    %cst_15 = arith.constant 2.000000e+00 : f32
    %28 = vector.broadcast %cst_15 : f32 to vector<128x128xf32>
    %29 = arith.addf %27, %28 : vector<128x128xf32>
    %30 = tpu.reciprocal %29 : vector<128x128xf32> -> vector<128x128xf32>
    %31 = arith.mulf %27, %30 : vector<128x128xf32>
    %cst_16 = arith.constant 3.000000e+01 : f32
    %32 = vector.broadcast %cst_16 : f32 to vector<128x128xf32>
    %33 = arith.cmpf ogt, %23, %32 : vector<128x128xf32>
    %cst_17 = arith.constant 1.000000e+00 : f32
    %34 = vector.broadcast %cst_17 : f32 to vector<128x128xf32>
    %35 = arith.select %33, %34, %31 : vector<128x128xi1>, vector<128x128xf32>
    %36 = arith.mulf %23, %35 : vector<128x128xf32>
    %c0_18 = arith.constant 0 : index
    %c0_19 = arith.constant 0 : index
    %37 = vector.load %arg6[%c0_18, %c0_19] : memref<128x64xf32, #tpu.memory_space<vmem>>, vector<128x64xf32>
    %cst_20 = arith.constant dense<0.000000e+00> : vector<128x64xf32>
    %38 = tpu.matmul %36, %37, %cst_20 {dimension_numbers = #tpu.dot_dimension_numbers<[1], [0], [0], [1], [0, 0, 1, 1], [], []>} : vector<128x128xf32>, vector<128x64xf32>, vector<128x64xf32> -> vector<128x64xf32>
    %c0_21 = arith.constant 0 : index
    %c0_22 = arith.constant 0 : index
    %39 = vector.load %arg7[%c0_21, %c0_22] : memref<1x64xf32, #tpu.memory_space<vmem>>, vector<1x64xf32>
    %40 = vector.broadcast %39 : vector<1x64xf32> to vector<128x64xf32>
    %41 = arith.addf %38, %40 : vector<128x64xf32>
    %42 = math.exp %41 : vector<128x64xf32>
    %cst_23 = arith.constant 2.000000e+00 : f32
    %43 = vector.broadcast %cst_23 : f32 to vector<128x64xf32>
    %44 = arith.addf %42, %43 : vector<128x64xf32>
    %45 = arith.mulf %42, %44 : vector<128x64xf32>
    %cst_24 = arith.constant 2.000000e+00 : f32
    %46 = vector.broadcast %cst_24 : f32 to vector<128x64xf32>
    %47 = arith.addf %45, %46 : vector<128x64xf32>
    %48 = tpu.reciprocal %47 : vector<128x64xf32> -> vector<128x64xf32>
    %49 = arith.mulf %45, %48 : vector<128x64xf32>
    %cst_25 = arith.constant 3.000000e+01 : f32
    %50 = vector.broadcast %cst_25 : f32 to vector<128x64xf32>
    %51 = arith.cmpf ogt, %41, %50 : vector<128x64xf32>
    %cst_26 = arith.constant 1.000000e+00 : f32
    %52 = vector.broadcast %cst_26 : f32 to vector<128x64xf32>
    %53 = arith.select %51, %52, %49 : vector<128x64xi1>, vector<128x64xf32>
    %54 = arith.mulf %41, %53 : vector<128x64xf32>
    %c0_27 = arith.constant 0 : index
    %c0_28 = arith.constant 0 : index
    %55 = vector.load %arg8[%c0_27, %c0_28] : memref<64x4xf32, #tpu.memory_space<vmem>>, vector<64x4xf32>
    %cst_29 = arith.constant dense<0.000000e+00> : vector<128x4xf32>
    %56 = tpu.matmul %54, %55, %cst_29 {dimension_numbers = #tpu.dot_dimension_numbers<[1], [0], [0], [1], [0, 0, 1, 1], [], []>} : vector<128x64xf32>, vector<64x4xf32>, vector<128x4xf32> -> vector<128x4xf32>
    %c0_30 = arith.constant 0 : index
    %c0_31 = arith.constant 0 : index
    %57 = vector.load %arg9[%c0_30, %c0_31] : memref<1x4xf32, #tpu.memory_space<vmem>>, vector<1x4xf32>
    %58 = vector.broadcast %57 : vector<1x4xf32> to vector<128x4xf32>
    %59 = arith.addf %56, %58 : vector<128x4xf32>
    %60 = math.tanh %59 : vector<128x4xf32>
    %c0_32 = arith.constant 0 : index
    %c0_33 = arith.constant 0 : index
    %61 = vector.load %arg10[%c0_32, %c0_33] : memref<128x4xf32, #tpu.memory_space<vmem>>, vector<128x4xf32>
    tpu.vector_store %arg10[%c0_32, %c0_33], %60 {strides = array<i32>} : memref<128x4xf32, #tpu.memory_space<vmem>>, vector<128x4xf32>,
    return
  }
  func.func @transform_0(%arg0: i32) -> (i32, i32) {
    %c0_i32 = arith.constant 0 : i32
    %c0_i32_0 = arith.constant 0 : i32
    return %arg0, %c0_i32 : i32, i32
  }
  func.func @transform_1(%arg0: i32) -> (i32, i32) {
    %c0_i32 = arith.constant 0 : i32
    %c0_i32_0 = arith.constant 0 : i32
    %c0_i32_1 = arith.constant 0 : i32
    return %c0_i32, %c0_i32_0 : i32, i32
  }
  func.func @transform_2(%arg0: i32) -> (i32, i32) {
    %c0_i32 = arith.constant 0 : i32
    %c0_i32_0 = arith.constant 0 : i32
    %c0_i32_1 = arith.constant 0 : i32
    return %c0_i32, %c0_i32_0 : i32, i32
  }
  func.func @transform_3(%arg0: i32) -> (i32, i32) {
    %c0_i32 = arith.constant 0 : i32
    %c0_i32_0 = arith.constant 0 : i32
    %c0_i32_1 = arith.constant 0 : i32
    return %c0_i32, %c0_i32_0 : i32, i32
  }
  func.func @transform_4(%arg0: i32) -> (i32, i32) {
    %c0_i32 = arith.constant 0 : i32
    %c0_i32_0 = arith.constant 0 : i32
    %c0_i32_1 = arith.constant 0 : i32
    return %c0_i32, %c0_i32_0 : i32, i32
  }
  func.func @transform_5(%arg0: i32) -> (i32, i32) {
    %c0_i32 = arith.constant 0 : i32
    %c0_i32_0 = arith.constant 0 : i32
    %c0_i32_1 = arith.constant 0 : i32
    return %c0_i32, %c0_i32_0 : i32, i32
  }
  func.func @transform_6(%arg0: i32) -> (i32, i32) {
    %c0_i32 = arith.constant 0 : i32
    %c0_i32_0 = arith.constant 0 : i32
    %c0_i32_1 = arith.constant 0 : i32
    return %c0_i32, %c0_i32_0 : i32, i32
  }
  func.func @transform_7(%arg0: i32) -> (i32, i32) {
    %c0_i32 = arith.constant 0 : i32
    %c0_i32_0 = arith.constant 0 : i32
    %c0_i32_1 = arith.constant 0 : i32
    return %c0_i32, %c0_i32_0 : i32, i32
  }
  func.func @transform_8(%arg0: i32) -> (i32, i32) {
    %c0_i32 = arith.constant 0 : i32
    %c0_i32_0 = arith.constant 0 : i32
    %c0_i32_1 = arith.constant 0 : i32
    return %c0_i32, %c0_i32_0 : i32, i32
  }
  func.func @transform_9(%arg0: i32) -> (i32, i32) {
    %c0_i32 = arith.constant 0 : i32
    %c0_i32_0 = arith.constant 0 : i32
    return %arg0, %c0_i32 : i32, i32
  }
}

</mosaic_0001>

<llo_original>
// kernel: acceleration_network_forward.1
$region0: #{acceleration_network_forward.1}
  #allocation0 [shape = 'u32[]', space=smem, size = 0x4, offset = 0x4, fixed_abs, tag = 'smem constant byte address 0x4 - core index']
  #allocation1 [shape = 'u32[72,128]{1,0:T(1,128)}', space=vmem, size = 0x9000, scoped, tag = 'internal scratch']
  %s0 = inlined_call_operand.vmem [shape: f32[200,32], index: 0, kind: input, shape index: {}]
  %s1 = inlined_call_operand.vmem [shape: f32[32,256], index: 1, kind: input, shape index: {}]
  %s2 = inlined_call_operand.vmem [shape: f32[1,256], index: 2, kind: input, shape index: {}]
  %s3 = inlined_call_operand.vmem [shape: f32[256,128], index: 3, kind: input, shape index: {}]
  %s4 = inlined_call_operand.vmem [shape: f32[1,128], index: 4, kind: input, shape index: {}]
  %s5 = inlined_call_operand.vmem [shape: f32[128,64], index: 5, kind: input, shape index: {}]
  %s6 = inlined_call_operand.vmem [shape: f32[1,64], index: 6, kind: input, shape index: {}]
  %s7 = inlined_call_operand.vmem [shape: f32[64,4], index: 7, kind: input, shape index: {}]
  %s8 = inlined_call_operand.vmem [shape: f32[1,4], index: 8, kind: input, shape index: {}]
  %s9 = inlined_call_operand.vmem [shape: f32[200,4], index: 9, kind: output, shape index: {}]
  %s10 = sld [smem:[#allocation0]]
  $region117: #{acceleration_network_forward.1} parent=0
    _
  %s12 = ssub.s32 1, %s10
  %s13 = scalar_select 0, %s12, %s10
  $region1: #{acceleration_network_forward.1} parent=0
    #allocation2 [shape = 'u8[131072]{0}', space=vmem, size = 0x20000, scoped, tag = 'output window, operand 0']
    loop: start=0, step=1, limit=4
    $region2: #{acceleration_network_forward.1} parent=1 // loop_pre_header
      _
    $region3: #{acceleration_network_forward.1} parent=1 // loop_header
      %s15 = sphi 0, %s19
      %p16 = scmp.ge.s32.totalorder %s15, 4
      %s25 = sphi 0, %s27
      %s28 = sphi 0, %s25
      %s29 = sphi 0, %s28
      %s45 = sphi 0, %s29
      %s49 = sphi 0, %s49
      %s51 = sphi 0, %s49
      %s52 = sphi 0, %s51
      %s66 = sphi 0, %s52
      %s70 = sphi 0, %s70
      %s72 = sphi 0, %s70
      %s73 = sphi 0, %s72
      %s87 = sphi 0, %s73
      %s91 = sphi 0, %s91
      %s93 = sphi 0, %s91
      %s94 = sphi 0, %s93
      %s108 = sphi 0, %s94
      %s112 = sphi 0, %s112
      %s114 = sphi 0, %s112
      %s115 = sphi 0, %s114
      %s129 = sphi 0, %s115
      %s133 = sphi 0, %s133
      %s135 = sphi 0, %s133
      %s136 = sphi 0, %s135
      %s150 = sphi 0, %s136
      %s154 = sphi 0, %s154
      %s156 = sphi 0, %s154
      %s157 = sphi 0, %s156
      %s171 = sphi 0, %s157
      %s175 = sphi 0, %s175
      %s177 = sphi 0, %s175
      %s178 = sphi 0, %s177
      %s192 = sphi 0, %s178
      %s196 = sphi 0, %s196
      %s198 = sphi 0, %s196
      %s199 = sphi 0, %s198
      %s213 = sphi 0, %s199
      %s219 = sphi 0, %s221
      %s222 = sphi 0, %s219
      %s223 = sphi 0, %s222
      %s239 = sphi 0, %s223
    $region4: #{acceleration_network_forward.1} parent=1 // loop_header_branch
      %18 = sbr.rel (%p16) target = $region8
    $region5: #{acceleration_network_forward.1} parent=1 // loop_body
      %s20 = ssub.s32 %s15, 1
      %s21 = ssub.s32 %s15, 2
      %s22 = sadd.s32 %s15, 1
      %s23 = ssub.s32 %s15, %s22
      %p24 = scmp.eq.s32.totalorder %s23, 0
      %s26 = sadd.s32 %s25, 1
      %s27 = scalar_select %p24, %s25, %s26
      %p30 = pneg %p24
      %p31 = scmp.eq.s32.totalorder %s15, 1
      %p32 = por %p30, %p31
      %p33 = scmp.ne.s32.totalorder %s25, %s28
      %p34 = scmp.eq.s32.totalorder %s15, 0
      %p35 = por %p33, %p34
      %p36 = scmp.ne.s32.totalorder %s25, %s28
      %p37 = scmp.eq.s32.totalorder %s20, 1
      %p38 = por %p36, %p37
      %p39 = scmp.ne.s32.totalorder %s28, %s29
      %p40 = scmp.eq.s32.totalorder %s20, 0
      %p41 = por %p39, %p40
      %p42 = scmp.ne.s32.totalorder %s28, %s29
      %p43 = scmp.eq.s32.totalorder %s21, 1
      %p44 = por %p42, %p43
      %p46 = scmp.ne.s32.totalorder %s29, %s45
      %p47 = scmp.eq.s32.totalorder %s21, 0
      %p48 = por %p46, %p47
      %s50 = sadd.s32 %s49, 1
      %p53 = scmp.eq.s32.totalorder %s15, 1
      %p54 = scmp.ne.s32.totalorder %s49, %s51
      %p55 = scmp.eq.s32.totalorder %s15, 0
      %p56 = por %p54, %p55
      %p57 = scmp.ne.s32.totalorder %s49, %s51
      %p58 = scmp.eq.s32.totalorder %s20, 1
      %p59 = por %p57, %p58
      %p60 = scmp.ne.s32.totalorder %s51, %s52
      %p61 = scmp.eq.s32.totalorder %s20, 0
      %p62 = por %p60, %p61
      %p63 = scmp.ne.s32.totalorder %s51, %s52
      %p64 = scmp.eq.s32.totalorder %s21, 1
      %p65 = por %p63, %p64
      %p67 = scmp.ne.s32.totalorder %s52, %s66
      %p68 = scmp.eq.s32.totalorder %s21, 0
      %p69 = por %p67, %p68
      %s71 = sadd.s32 %s70, 1
      %p74 = scmp.eq.s32.totalorder %s15, 1
      %p75 = scmp.ne.s32.totalorder %s70, %s72
      %p76 = scmp.eq.s32.totalorder %s15, 0
      %p77 = por %p75, %p76
      %p78 = scmp.ne.s32.totalorder %s70, %s72
      %p79 = scmp.eq.s32.totalorder %s20, 1
      %p80 = por %p78, %p79
      %p81 = scmp.ne.s32.totalorder %s72, %s73
      %p82 = scmp.eq.s32.totalorder %s20, 0
      %p83 = por %p81, %p82
      %p84 = scmp.ne.s32.totalorder %s72, %s73
      %p85 = scmp.eq.s32.totalorder %s21, 1
      %p86 = por %p84, %p85
      %p88 = scmp.ne.s32.totalorder %s73, %s87
      %p89 = scmp.eq.s32.totalorder %s21, 0
      %p90 = por %p88, %p89
      %s92 = sadd.s32 %s91, 1
      %p95 = scmp.eq.s32.totalorder %s15, 1
      %p96 = scmp.ne.s32.totalorder %s91, %s93
      %p97 = scmp.eq.s32.totalorder %s15, 0
      %p98 = por %p96, %p97
      %p99 = scmp.ne.s32.totalorder %s91, %s93
      %p100 = scmp.eq.s32.totalorder %s20, 1
      %p101 = por %p99, %p100
      %p102 = scmp.ne.s32.totalorder %s93, %s94
      %p103 = scmp.eq.s32.totalorder %s20, 0
      %p104 = por %p102, %p103
      %p105 = scmp.ne.s32.totalorder %s93, %s94
      %p106 = scmp.eq.s32.totalorder %s21, 1
      %p107 = por %p105, %p106
      %p109 = scmp.ne.s32.totalorder %s94, %s108
      %p110 = scmp.eq.s32.totalorder %s21, 0
      %p111 = por %p109, %p110
      %s113 = sadd.s32 %s112, 1
      %p116 = scmp.eq.s32.totalorder %s15, 1
      %p117 = scmp.ne.s32.totalorder %s112, %s114
      %p118 = scmp.eq.s32.totalorder %s15, 0
      %p119 = por %p117, %p118
      %p120 = scmp.ne.s32.totalorder %s112, %s114
      %p121 = scmp.eq.s32.totalorder %s20, 1
      %p122 = por %p120, %p121
      %p123 = scmp.ne.s32.totalorder %s114, %s115
      %p124 = scmp.eq.s32.totalorder %s20, 0
      %p125 = por %p123, %p124
      %p126 = scmp.ne.s32.totalorder %s114, %s115
      %p127 = scmp.eq.s32.totalorder %s21, 1
      %p128 = por %p126, %p127
      %p130 = scmp.ne.s32.totalorder %s115, %s129
      %p131 = scmp.eq.s32.totalorder %s21, 0
      %p132 = por %p130, %p131
      %s134 = sadd.s32 %s133, 1
      %p137 = scmp.eq.s32.totalorder %s15, 1
      %p138 = scmp.ne.s32.totalorder %s133, %s135
      %p139 = scmp.eq.s32.totalorder %s15, 0
      %p140 = por %p138, %p139
      %p141 = scmp.ne.s32.totalorder %s133, %s135
      %p142 = scmp.eq.s32.totalorder %s20, 1
      %p143 = por %p141, %p142
      %p144 = scmp.ne.s32.totalorder %s135, %s136
      %p145 = scmp.eq.s32.totalorder %s20, 0
      %p146 = por %p144, %p145
      %p147 = scmp.ne.s32.totalorder %s135, %s136
      %p148 = scmp.eq.s32.totalorder %s21, 1
      %p149 = por %p147, %p148
      %p151 = scmp.ne.s32.totalorder %s136, %s150
      %p152 = scmp.eq.s32.totalorder %s21, 0
      %p153 = por %p151, %p152
      %s155 = sadd.s32 %s154, 1
      %p158 = scmp.eq.s32.totalorder %s15, 1
      %p159 = scmp.ne.s32.totalorder %s154, %s156
      %p160 = scmp.eq.s32.totalorder %s15, 0
      %p161 = por %p159, %p160
      %p162 = scmp.ne.s32.totalorder %s154, %s156
      %p163 = scmp.eq.s32.totalorder %s20, 1
      %p164 = por %p162, %p163
      %p165 = scmp.ne.s32.totalorder %s156, %s157
      %p166 = scmp.eq.s32.totalorder %s20, 0
      %p167 = por %p165, %p166
      %p168 = scmp.ne.s32.totalorder %s156, %s157
      %p169 = scmp.eq.s32.totalorder %s21, 1
      %p170 = por %p168, %p169
      %p172 = scmp.ne.s32.totalorder %s157, %s171
      %p173 = scmp.eq.s32.totalorder %s21, 0
      %p174 = por %p172, %p173
      %s176 = sadd.s32 %s175, 1
      %p179 = scmp.eq.s32.totalorder %s15, 1
      %p180 = scmp.ne.s32.totalorder %s175, %s177
      %p181 = scmp.eq.s32.totalorder %s15, 0
      %p182 = por %p180, %p181
      %p183 = scmp.ne.s32.totalorder %s175, %s177
      %p184 = scmp.eq.s32.totalorder %s20, 1
      %p185 = por %p183, %p184
      %p186 = scmp.ne.s32.totalorder %s177, %s178
      %p187 = scmp.eq.s32.totalorder %s20, 0
      %p188 = por %p186, %p187
      %p189 = scmp.ne.s32.totalorder %s177, %s178
      %p190 = scmp.eq.s32.totalorder %s21, 1
      %p191 = por %p189, %p190
      %p193 = scmp.ne.s32.totalorder %s178, %s192
      %p194 = scmp.eq.s32.totalorder %s21, 0
      %p195 = por %p193, %p194
      %s197 = sadd.s32 %s196, 1
      %p200 = scmp.eq.s32.totalorder %s15, 1
      %p201 = scmp.ne.s32.totalorder %s196, %s198
      %p202 = scmp.eq.s32.totalorder %s15, 0
      %p203 = por %p201, %p202
      %p204 = scmp.ne.s32.totalorder %s196, %s198
      %p205 = scmp.eq.s32.totalorder %s20, 1
      %p206 = por %p204, %p205
      %p207 = scmp.ne.s32.totalorder %s198, %s199
      %p208 = scmp.eq.s32.totalorder %s20, 0
      %p209 = por %p207, %p208
      %p210 = scmp.ne.s32.totalorder %s198, %s199
      %p211 = scmp.eq.s32.totalorder %s21, 1
      %p212 = por %p210, %p211
      %p214 = scmp.ne.s32.totalorder %s199, %s213
      %p215 = scmp.eq.s32.totalorder %s21, 0
      %p216 = por %p214, %p215
      %s217 = ssub.s32 %s15, %s22
      %p218 = scmp.eq.s32.totalorder %s217, 0
      %s220 = sadd.s32 %s219, 1
      %s221 = scalar_select %p218, %s219, %s220
      %p224 = pneg %p218
      %p225 = scmp.eq.s32.totalorder %s15, 1
      %p226 = por %p224, %p225
      %p227 = scmp.ne.s32.totalorder %s219, %s222
      %p228 = scmp.eq.s32.totalorder %s15, 0
      %p229 = por %p227, %p228
      %p230 = scmp.ne.s32.totalorder %s219, %s222
      %p231 = scmp.eq.s32.totalorder %s20, 1
      %p232 = por %p230, %p231
      %p233 = scmp.ne.s32.totalorder %s222, %s223
      %p234 = scmp.eq.s32.totalorder %s20, 0
      %p235 = por %p233, %p234
      %p236 = scmp.ne.s32.totalorder %s222, %s223
      %p237 = scmp.eq.s32.totalorder %s21, 1
      %p238 = por %p236, %p237
      %p240 = scmp.ne.s32.totalorder %s223, %s239
      %p241 = scmp.eq.s32.totalorder %s21, 0
      %p242 = por %p240, %p241
      %p243 = scmp.le.s32.totalorder 1, %s15
      %p244 = scmp.lt.s32.totalorder %s15, 3
      %p245 = pnand %p243, %p244
      %p246 = pneg %p245
      // Predicated region
      $region9: #{acceleration_network_forward.1} parent=5 // pred_check
        _
      $region10: #{acceleration_network_forward.1} parent=5 // pred_check_branch
        %248 = sbr.rel (%p245) target = $region12
      $region11: #{acceleration_network_forward.1} parent=5 // pred_region
        %s249 = ssub.s32 %s15, 1
        // Predicated region
        $region13: #{acceleration_network_forward.1} parent=11 // pred_check
          %p250 = pneg %p62
        $region14: #{acceleration_network_forward.1} parent=11 // pred_check_branch
          %252 = sbr.rel (%p250) target = $region16
        $region15: #{acceleration_network_forward.1} parent=11 // pred_region
          _
        $region16: #{acceleration_network_forward.1} parent=11 // pred_fallthru
          _
        // Predicated region
        $region17: #{acceleration_network_forward.1} parent=11 // pred_check
          %p253 = pneg %p83
        $region18: #{acceleration_network_forward.1} parent=11 // pred_check_branch
          %255 = sbr.rel (%p253) target = $region20
        $region19: #{acceleration_network_forward.1} parent=11 // pred_region
          _
        $region20: #{acceleration_network_forward.1} parent=11 // pred_fallthru
          _
        // Predicated region
        $region21: #{acceleration_network_forward.1} parent=11 // pred_check
          %p256 = pneg %p104
        $region22: #{acceleration_network_forward.1} parent=11 // pred_check_branch
          %258 = sbr.rel (%p256) target = $region24
        $region23: #{acceleration_network_forward.1} parent=11 // pred_region
          _
        $region24: #{acceleration_network_forward.1} parent=11 // pred_fallthru
          _
        // Predicated region
        $region25: #{acceleration_network_forward.1} parent=11 // pred_check
          %p259 = pneg %p125
        $region26: #{acceleration_network_forward.1} parent=11 // pred_check_branch
          %261 = sbr.rel (%p259) target = $region28
        $region27: #{acceleration_network_forward.1} parent=11 // pred_region
          _
        $region28: #{acceleration_network_forward.1} parent=11 // pred_fallthru
          _
        // Predicated region
        $region29: #{acceleration_network_forward.1} parent=11 // pred_check
          %p262 = pneg %p146
        $region30: #{acceleration_network_forward.1} parent=11 // pred_check_branch
          %264 = sbr.rel (%p262) target = $region32
        $region31: #{acceleration_network_forward.1} parent=11 // pred_region
          _
        $region32: #{acceleration_network_forward.1} parent=11 // pred_fallthru
          _
        // Predicated region
        $region33: #{acceleration_network_forward.1} parent=11 // pred_check
          %p265 = pneg %p167
        $region34: #{acceleration_network_forward.1} parent=11 // pred_check_branch
          %267 = sbr.rel (%p265) target = $region36
        $region35: #{acceleration_network_forward.1} parent=11 // pred_region
          _
        $region36: #{acceleration_network_forward.1} parent=11 // pred_fallthru
          _
        // Predicated region
        $region37: #{acceleration_network_forward.1} parent=11 // pred_check
          %p268 = pneg %p188
        $region38: #{acceleration_network_forward.1} parent=11 // pred_check_branch
          %270 = sbr.rel (%p268) target = $region40
        $region39: #{acceleration_network_forward.1} parent=11 // pred_region
          _
        $region40: #{acceleration_network_forward.1} parent=11 // pred_fallthru
          _
        // Predicated region
        $region41: #{acceleration_network_forward.1} parent=11 // pred_check
          %p271 = pneg %p209
        $region42: #{acceleration_network_forward.1} parent=11 // pred_check_branch
          %273 = sbr.rel (%p271) target = $region44
        $region43: #{acceleration_network_forward.1} parent=11 // pred_region
          _
        $region44: #{acceleration_network_forward.1} parent=11 // pred_fallthru
          _
      $region12: #{acceleration_network_forward.1} parent=5 // pred_fallthru
        _
      %p274 = scmp.lt.s32.totalorder %s15, 2
      // Predicated region
      $region45: #{acceleration_network_forward.1} parent=5 // pred_check
        %p275 = pneg %p274
      $region46: #{acceleration_network_forward.1} parent=5 // pred_check_branch
        %277 = sbr.rel (%p275) target = $region48
      $region47: #{acceleration_network_forward.1} parent=5 // pred_region
        // Predicated region
        $region49: #{acceleration_network_forward.1} parent=47 // pred_check
          %p278 = pneg %p35
        $region50: #{acceleration_network_forward.1} parent=47 // pred_check_branch
          %280 = sbr.rel (%p278) target = $region52
        $region51: #{acceleration_network_forward.1} parent=47 // pred_region
          %s281 = smul.u32 16, %s15
          %s282 = ssub.s32 25, %s281
          %p283 = scmp.lt.s32.totalorder %s282, 16
          %s284 = scalar_select %p283, %s282, 16
          %s285 = smul.u32 8, %s284
          %p286 = scmp.lt.s32.totalorder %s281, 24
          %s287 = scalar_select %p286, %s281, 24
          %s288 = smul.addr %s287, 8
          %s289 = scalar_lea.vmem %s0, %s288
          %s290 = smul.u32 16, %s15
          %s291 = ssub.s32 25, %s290
          %p292 = scmp.lt.s32.totalorder %s291, 16
          %s293 = scalar_select %p292, %s291, 16
          %s294 = smul.u32 8, %s293
        $region52: #{acceleration_network_forward.1} parent=47 // pred_fallthru
          _
      $region48: #{acceleration_network_forward.1} parent=5 // pred_fallthru
        _
      %p295 = scmp.le.s32.totalorder 1, %s15
      %p296 = scmp.lt.s32.totalorder %s15, 3
      %p297 = pnand %p295, %p296
      %p298 = pneg %p297
      // Predicated region
      $region53: #{acceleration_network_forward.1} parent=5 // pred_check
        _
      $region54: #{acceleration_network_forward.1} parent=5 // pred_check_branch
        %300 = sbr.rel (%p297) target = $region56
      $region55: #{acceleration_network_forward.1} parent=5 // pred_region
        %s301 = ssub.s32 %s15, 1
        %s302 = smul.u32 16, %s20
        %s303 = ssub.s32 25, %s302
        %p304 = scmp.lt.s32.totalorder %s303, 16
        %s305 = scalar_select %p304, %s303, 16
        %s306 = smul.u32 8, %s305
        %p307 = scmp.lt.s32.totalorder %s302, 24
        %s308 = scalar_select %p307, %s302, 24
        %s309 = smul.addr %s308, 8
        %s310 = scalar_lea.vmem %s0, %s309
        %p311 = pneg %p41
        %p312 = pneg %p38
        %p313 = pneg %p62
        %p314 = pneg %p59
        %p315 = pneg %p83
        %p316 = pneg %p80
        %p317 = pneg %p104
        %p318 = pneg %p101
        %p319 = pneg %p125
        %p320 = pneg %p122
        %p321 = pneg %p146
        %p322 = pneg %p143
        %p323 = pneg %p167
        %p324 = pneg %p164
        %p325 = pneg %p188
        %p326 = pneg %p185
        %p327 = pneg %p209
        %p328 = pneg %p206
        %p329 = pneg %p235
        %p330 = pneg %p232
        %s331 = sand.u32 %s222, 1
        %s332 = sand.u32 %s222, 1
        %s333 = smul.addr %s332, 128
        %s334 = scalar_lea.vmem [#allocation2], %s333
        %s335 = smul.u32 16, %s20
        %s336 = ssub.s32 25, %s335
        %p337 = scmp.lt.s32.totalorder %s336, 16
        %s338 = scalar_select %p337, %s336, 16
        %s339 = smul.u32 8, %s338
        %p340 = scmp.lt.s32.totalorder %s335, 24
        %s341 = scalar_select %p340, %s335, 24
        %s342 = smul.addr %s341, 8
        %s343 = scalar_lea.vmem %s0, %s342
        %s344 = smul.u32 16, %s20
        %s345 = ssub.s32 25, %s344
        %p346 = scmp.lt.s32.totalorder %s345, 16
        %s347 = scalar_select %p346, %s345, 16
        %s348 = smul.u32 8, %s347
        %s349 = smul.u32 16, %s20
        %s350 = ssub.s32 25, %s349
        %p351 = scmp.lt.s32.totalorder %s350, 16
        %s352 = scalar_select %p351, %s350, 16
        %s353 = smul.u32 8, %s352
        %v354 = vld [vmem:[%s343] sm:$0xff]
        %v355 = vld [vmem:[%s343 + $0x8] sm:$0xff]
        %v356 = vld [vmem:[%s343 + $0x10] sm:$0xff]
        %v357 = vld [vmem:[%s343 + $0x18] sm:$0xff]
        %v358 = vld [vmem:[%s343 + $0x20] sm:$0xff]
        %v359 = vld [vmem:[%s343 + $0x28] sm:$0xff]
        %v360 = vld [vmem:[%s343 + $0x30] sm:$0xff]
        %v361 = vld [vmem:[%s343 + $0x38] sm:$0xff]
        %v362 = vld [vmem:[%s343 + $0x40] sm:$0xff]
        %v363 = vld [vmem:[%s343 + $0x48] sm:$0xff]
        %v364 = vld [vmem:[%s343 + $0x50] sm:$0xff]
        %v365 = vld [vmem:[%s343 + $0x58] sm:$0xff]
        %v366 = vld [vmem:[%s343 + $0x60] sm:$0xff]
        %v367 = vld [vmem:[%s343 + $0x68] sm:$0xff]
        %v368 = vld [vmem:[%s343 + $0x70] sm:$0xff]
        %v369 = vld [vmem:[%s343 + $0x78] sm:$0xff]
        %v370 = vld [vmem:[%s1] sm:$0xff]
        %v371 = vld [vmem:[%s1 + $0x8] sm:$0xff]
        %v372 = vld [vmem:[%s1 + $0x10] sm:$0xff]
        %v373 = vld [vmem:[%s1 + $0x18] sm:$0xff]
        %v374 = vld [vmem:[%s1 + $0x20] sm:$0xff]
        %v375 = vld [vmem:[%s1 + $0x28] sm:$0xff]
        %v376 = vld [vmem:[%s1 + $0x30] sm:$0xff]
        %v377 = vld [vmem:[%s1 + $0x38] sm:$0xff]
        %v378 = vld [vmem:[%s2] sm:$0x3]
        %v380 = vperm.slane %v378, 0
        %v381 = vperm.slane %v378, 1
        %vm384 = vcmask 261120
        %v386 = vsel %vm384, %v354, 0
        %v389 = vsel %vm384, %v355, 0
        %v392 = vsel %vm384, %v356, 0
        %v395 = vsel %vm384, %v357, 0
        %v398 = vsel %vm384, %v358, 0
        %v401 = vsel %vm384, %v359, 0
        %v404 = vsel %vm384, %v360, 0
        %v407 = vsel %vm384, %v361, 0
        %v410 = vsel %vm384, %v362, 0
        %v413 = vsel %vm384, %v363, 0
        %v416 = vsel %vm384, %v364, 0
        %v419 = vsel %vm384, %v365, 0
        %v422 = vsel %vm384, %v366, 0
        %v425 = vsel %vm384, %v367, 0
        %v428 = vsel %vm384, %v368, 0
        %v431 = vsel %vm384, %v369, 0
        %433 = vmatpush.msra.mxu0 0.0
        %434 = vmatpush.msra.mxu0 0.0
        %435 = vmatpush.msra.mxu0 0.0
        %436 = vmatpush.msra.mxu0 0.0
        %437 = vmatpush.msra.mxu0 0.0
        %438 = vmatpush.msra.mxu0 0.0
        %439 = vmatpush.msra.mxu0 0.0
        %440 = vmatpush.msra.mxu0 0.0
        %441 = vmatpush.msra.mxu0 0.0
        %442 = vmatpush.msra.mxu0 0.0
        %443 = vmatpush.msra.mxu0 0.0
        %444 = vmatpush.msra.mxu0 0.0
        %445 = vmatpush.msra.mxu0 %v376
        %446 = vmatpush.msra.mxu0 %v374
        %447 = vmatpush.msra.mxu0 %v372
        %448 = vmatpush.msra.mxu0 %v370
        %449 = vmatmul.f32.gmra.mxu0 %v386
        %v450 = vpop.f32.mrf.mxu0
        %v451 = vadd.f32 %v380, %v450
        %452 = vmatmul.f32.gmra.mxu0 %v389
        %v453 = vpop.f32.mrf.mxu0
        %v454 = vadd.f32 %v380, %v453
        %455 = vmatmul.f32.gmra.mxu0 %v392
        %v456 = vpop.f32.mrf.mxu0
        %v457 = vadd.f32 %v380, %v456
        %458 = vmatmul.f32.gmra.mxu0 %v395
        %v459 = vpop.f32.mrf.mxu0
        %v460 = vadd.f32 %v380, %v459
        %461 = vmatmul.f32.gmra.mxu0 %v398
        %v462 = vpop.f32.mrf.mxu0
        %v463 = vadd.f32 %v380, %v462
        %464 = vmatmul.f32.gmra.mxu0 %v401
        %v465 = vpop.f32.mrf.mxu0
        %v466 = vadd.f32 %v380, %v465
        %467 = vmatmul.f32.gmra.mxu0 %v404
        %v468 = vpop.f32.mrf.mxu0
        %v469 = vadd.f32 %v380, %v468
        %470 = vmatmul.f32.gmra.mxu0 %v407
        %v471 = vpop.f32.mrf.mxu0
        %v472 = vadd.f32 %v380, %v471
        %473 = vmatmul.f32.gmra.mxu0 %v410
        %v474 = vpop.f32.mrf.mxu0
        %v475 = vadd.f32 %v380, %v474
        %476 = vmatmul.f32.gmra.mxu0 %v413
        %v477 = vpop.f32.mrf.mxu0
        %v478 = vadd.f32 %v380, %v477
        %479 = vmatmul.f32.gmra.mxu0 %v416
        %v480 = vpop.f32.mrf.mxu0
        %v481 = vadd.f32 %v380, %v480
        %482 = vmatmul.f32.gmra.mxu0 %v419
        %v483 = vpop.f32.mrf.mxu0
        %v484 = vadd.f32 %v380, %v483
        %485 = vmatmul.f32.gmra.mxu0 %v422
        %v486 = vpop.f32.mrf.mxu0
        %v487 = vadd.f32 %v380, %v486
        %488 = vmatmul.f32.gmra.mxu0 %v425
        %v489 = vpop.f32.mrf.mxu0
        %v490 = vadd.f32 %v380, %v489
        %491 = vmatmul.f32.gmra.mxu0 %v428
        %v492 = vpop.f32.mrf.mxu0
        %v493 = vadd.f32 %v380, %v492
        %494 = vmatmul.f32.gmra.mxu0 %v431
        %v495 = vpop.f32.mrf.mxu0
        %v496 = vadd.f32 %v380, %v495
        %497 = vdwg.mxu0
        %498 = vmatpush.msra.mxu0 0.0
        %499 = vmatpush.msra.mxu0 0.0
        %500 = vmatpush.msra.mxu0 0.0
        %501 = vmatpush.msra.mxu0 0.0
        %502 = vmatpush.msra.mxu0 0.0
        %503 = vmatpush.msra.mxu0 0.0
        %504 = vmatpush.msra.mxu0 0.0
        %505 = vmatpush.msra.mxu0 0.0
        %506 = vmatpush.msra.mxu0 0.0
        %507 = vmatpush.msra.mxu0 0.0
        %508 = vmatpush.msra.mxu0 0.0
        %509 = vmatpush.msra.mxu0 0.0
        %510 = vmatpush.msra.mxu0 %v377
        %511 = vmatpush.msra.mxu0 %v375
        %512 = vmatpush.msra.mxu0 %v373
        %513 = vmatpush.msra.mxu0 %v371
        %514 = vmatmul.f32.gmra.mxu0 %v386
        %v515 = vpop.f32.mrf.mxu0
        %v516 = vadd.f32 %v381, %v515
        %517 = vmatmul.f32.gmra.mxu0 %v389
        %v518 = vpop.f32.mrf.mxu0
        %v519 = vadd.f32 %v381, %v518
        %520 = vmatmul.f32.gmra.mxu0 %v392
        %v521 = vpop.f32.mrf.mxu0
        %v522 = vadd.f32 %v381, %v521
        %523 = vmatmul.f32.gmra.mxu0 %v395
        %v524 = vpop.f32.mrf.mxu0
        %v525 = vadd.f32 %v381, %v524
        %526 = vmatmul.f32.gmra.mxu0 %v398
        %v527 = vpop.f32.mrf.mxu0
        %v528 = vadd.f32 %v381, %v527
        %529 = vmatmul.f32.gmra.mxu0 %v401
        %v530 = vpop.f32.mrf.mxu0
        %v531 = vadd.f32 %v381, %v530
        %532 = vmatmul.f32.gmra.mxu0 %v404
        %v533 = vpop.f32.mrf.mxu0
        %v534 = vadd.f32 %v381, %v533
        %535 = vmatmul.f32.gmra.mxu0 %v407
        %v536 = vpop.f32.mrf.mxu0
        %v537 = vadd.f32 %v381, %v536
        %538 = vmatmul.f32.gmra.mxu0 %v410
        %v539 = vpop.f32.mrf.mxu0
        %v540 = vadd.f32 %v381, %v539
        %541 = vmatmul.f32.gmra.mxu0 %v413
        %v542 = vpop.f32.mrf.mxu0
        %v543 = vadd.f32 %v381, %v542
        %544 = vmatmul.f32.gmra.mxu0 %v416
        %v545 = vpop.f32.mrf.mxu0
        %v546 = vadd.f32 %v381, %v545
        %547 = vmatmul.f32.gmra.mxu0 %v419
        %v548 = vpop.f32.mrf.mxu0
        %v549 = vadd.f32 %v381, %v548
        %550 = vmatmul.f32.gmra.mxu0 %v422
        %v551 = vpop.f32.mrf.mxu0
        %v552 = vadd.f32 %v381, %v551
        %553 = vmatmul.f32.gmra.mxu0 %v425
        %v554 = vpop.f32.mrf.mxu0
        %v555 = vadd.f32 %v381, %v554
        %556 = vmatmul.f32.gmra.mxu0 %v428
        %v557 = vpop.f32.mrf.mxu0
        %v558 = vadd.f32 %v381, %v557
        %559 = vmatmul.f32.gmra.mxu0 %v431
        %v560 = vpop.f32.mrf.mxu0
        %v561 = vadd.f32 %v381, %v560
        %562 = vdwg.mxu0
        %v563 = vmul.f32 %v451, 1.442695
        %v564 = vpow.pop %v563
        %v565 = vmul.f32 %v516, 1.442695
        %v566 = vpow.pop %v565
        %v567 = vmul.f32 %v454, 1.442695
        %v568 = vpow.pop %v567
        %v569 = vmul.f32 %v519, 1.442695
        %v570 = vpow.pop %v569
        %v571 = vmul.f32 %v457, 1.442695
        %v572 = vpow.pop %v571
        %v573 = vmul.f32 %v522, 1.442695
        %v574 = vpow.pop %v573
        %v575 = vmul.f32 %v460, 1.442695
        %v576 = vpow.pop %v575
        %v577 = vmul.f32 %v525, 1.442695
        %v578 = vpow.pop %v577
        %v579 = vmul.f32 %v463, 1.442695
        %v580 = vpow.pop %v579
        %v581 = vmul.f32 %v528, 1.442695
        %v582 = vpow.pop %v581
        %v583 = vmul.f32 %v466, 1.442695
        %v584 = vpow.pop %v583
        %v585 = vmul.f32 %v531, 1.442695
        %v586 = vpow.pop %v585
        %v587 = vmul.f32 %v469, 1.442695
        %v588 = vpow.pop %v587
        %v589 = vmul.f32 %v534, 1.442695
        %v590 = vpow.pop %v589
        %v591 = vmul.f32 %v472, 1.442695
        %v592 = vpow.pop %v591
        %v593 = vmul.f32 %v537, 1.442695
        %v594 = vpow.pop %v593
        %v595 = vmul.f32 %v475, 1.442695
        %v596 = vpow.pop %v595
        %v597 = vmul.f32 %v540, 1.442695
        %v598 = vpow.pop %v597
        %v599 = vmul.f32 %v478, 1.442695
        %v600 = vpow.pop %v599
        %v601 = vmul.f32 %v543, 1.442695
        %v602 = vpow.pop %v601
        %v603 = vmul.f32 %v481, 1.442695
        %v604 = vpow.pop %v603
        %v605 = vmul.f32 %v546, 1.442695
        %v606 = vpow.pop %v605
        %v607 = vmul.f32 %v484, 1.442695
        %v608 = vpow.pop %v607
        %v609 = vmul.f32 %v549, 1.442695
        %v610 = vpow.pop %v609
        %v611 = vmul.f32 %v487, 1.442695
        %v612 = vpow.pop %v611
        %v613 = vmul.f32 %v552, 1.442695
        %v614 = vpow.pop %v613
        %v615 = vmul.f32 %v490, 1.442695
        %v616 = vpow.pop %v615
        %v617 = vmul.f32 %v555, 1.442695
        %v618 = vpow.pop %v617
        %v619 = vmul.f32 %v493, 1.442695
        %v620 = vpow.pop %v619
        %v621 = vmul.f32 %v558, 1.442695
        %v622 = vpow.pop %v621
        %v623 = vmul.f32 %v496, 1.442695
        %v624 = vpow.pop %v623
        %v625 = vmul.f32 %v561, 1.442695
        %v626 = vpow.pop %v625
        %v627 = vadd.f32 %v564, 2.0
        %v628 = vadd.f32 %v566, 2.0
        %v629 = vadd.f32 %v568, 2.0
        %v630 = vadd.f32 %v570, 2.0
        %v631 = vadd.f32 %v572, 2.0
        %v632 = vadd.f32 %v574, 2.0
        %v633 = vadd.f32 %v576, 2.0
        %v634 = vadd.f32 %v578, 2.0
        %v635 = vadd.f32 %v580, 2.0
        %v636 = vadd.f32 %v582, 2.0
        %v637 = vadd.f32 %v584, 2.0
        %v638 = vadd.f32 %v586, 2.0
        %v639 = vadd.f32 %v588, 2.0
        %v640 = vadd.f32 %v590, 2.0
        %v641 = vadd.f32 %v592, 2.0
        %v642 = vadd.f32 %v594, 2.0
        %v643 = vadd.f32 %v596, 2.0
        %v644 = vadd.f32 %v598, 2.0
        %v645 = vadd.f32 %v600, 2.0
        %v646 = vadd.f32 %v602, 2.0
        %v647 = vadd.f32 %v604, 2.0
        %v648 = vadd.f32 %v606, 2.0
        %v649 = vadd.f32 %v608, 2.0
        %v650 = vadd.f32 %v610, 2.0
        %v651 = vadd.f32 %v612, 2.0
        %v652 = vadd.f32 %v614, 2.0
        %v653 = vadd.f32 %v616, 2.0
        %v654 = vadd.f32 %v618, 2.0
        %v655 = vadd.f32 %v620, 2.0
        %v656 = vadd.f32 %v622, 2.0
        %v657 = vadd.f32 %v624, 2.0
        %v658 = vadd.f32 %v626, 2.0
        %v659 = vmul.f32 %v564, %v627
        %v660 = vmul.f32 %v566, %v628
        %v661 = vmul.f32 %v568, %v629
        %v662 = vmul.f32 %v570, %v630
        %v663 = vmul.f32 %v572, %v631
        %v664 = vmul.f32 %v574, %v632
        %v665 = vmul.f32 %v576, %v633
        %v666 = vmul.f32 %v578, %v634
        %v667 = vmul.f32 %v580, %v635
        %v668 = vmul.f32 %v582, %v636
        %v669 = vmul.f32 %v584, %v637
        %v670 = vmul.f32 %v586, %v638
        %v671 = vmul.f32 %v588, %v639
        %v672 = vmul.f32 %v590, %v640
        %v673 = vmul.f32 %v592, %v641
        %v674 = vmul.f32 %v594, %v642
        %v675 = vmul.f32 %v596, %v643
        %v676 = vmul.f32 %v598, %v644
        %v677 = vmul.f32 %v600, %v645
        %v678 = vmul.f32 %v602, %v646
        %v679 = vmul.f32 %v604, %v647
        %v680 = vmul.f32 %v606, %v648
        %v681 = vmul.f32 %v608, %v649
        %v682 = vmul.f32 %v610, %v650
        %v683 = vmul.f32 %v612, %v651
        %v684 = vmul.f32 %v614, %v652
        %v685 = vmul.f32 %v616, %v653
        %v686 = vmul.f32 %v618, %v654
        %v687 = vmul.f32 %v620, %v655
        %v688 = vmul.f32 %v622, %v656
        %v689 = vmul.f32 %v624, %v657
        %v690 = vmul.f32 %v626, %v658
        %v691 = vadd.f32 %v659, 2.0
        %v692 = vadd.f32 %v660, 2.0
        %v693 = vadd.f32 %v661, 2.0
        %v694 = vadd.f32 %v662, 2.0
        %v695 = vadd.f32 %v663, 2.0
        %v696 = vadd.f32 %v664, 2.0
        %v697 = vadd.f32 %v665, 2.0
        %v698 = vadd.f32 %v666, 2.0
        %v699 = vadd.f32 %v667, 2.0
        %v700 = vadd.f32 %v668, 2.0
        %v701 = vadd.f32 %v669, 2.0
        %v702 = vadd.f32 %v670, 2.0
        %v703 = vadd.f32 %v671, 2.0
        %v704 = vadd.f32 %v672, 2.0
        %v705 = vadd.f32 %v673, 2.0
        %v706 = vadd.f32 %v674, 2.0
        %v707 = vadd.f32 %v675, 2.0
        %v708 = vadd.f32 %v676, 2.0
        %v709 = vadd.f32 %v677, 2.0
        %v710 = vadd.f32 %v678, 2.0
        %v711 = vadd.f32 %v679, 2.0
        %v712 = vadd.f32 %v680, 2.0
        %v713 = vadd.f32 %v681, 2.0
        %v714 = vadd.f32 %v682, 2.0
        %v715 = vadd.f32 %v683, 2.0
        %v716 = vadd.f32 %v684, 2.0
        %v717 = vadd.f32 %v685, 2.0
        %v718 = vadd.f32 %v686, 2.0
        %v719 = vadd.f32 %v687, 2.0
        %v720 = vadd.f32 %v688, 2.0
        %v721 = vadd.f32 %v689, 2.0
        %v722 = vadd.f32 %v690, 2.0
        %v723 = vrcp.pop %v691
        %v724 = vmul.f32 %v691, %v723
        %v725 = vsub.f32 1.0, %v724
        %v726 = vmul.f32 %v723, %v725
        %v727 = vadd.f32 %v723, %v726
        %vm728 = vweird.f32 %v691
        %vm729 = vweird.f32 %v723
        %vm730 = vmor %vm728, %vm729
        %v731 = vsel %vm730, %v723, %v727
        %v732 = vand.u32 2147483647, %v691
        %vm733 = vcmp.eq.f32.partialorder %v732, 8.507059e+37
        %v734 = vand.u32 %v691, 2147483648
        %v735 = vor.u32 1.1754944e-38, %v734
        %v736 = vsel %vm733, %v735, %v731
        %v737 = vrcp.pop %v692
        %v738 = vmul.f32 %v692, %v737
        %v739 = vsub.f32 1.0, %v738
        %v740 = vmul.f32 %v737, %v739
        %v741 = vadd.f32 %v737, %v740
        %vm742 = vweird.f32 %v692
        %vm743 = vweird.f32 %v737
        %vm744 = vmor %vm742, %vm743
        %v745 = vsel %vm744, %v737, %v741
        %v746 = vand.u32 2147483647, %v692
        %vm747 = vcmp.eq.f32.partialorder %v746, 8.507059e+37
        %v748 = vand.u32 %v692, 2147483648
        %v749 = vor.u32 1.1754944e-38, %v748
        %v750 = vsel %vm747, %v749, %v745
        %v751 = vrcp.pop %v693
        %v752 = vmul.f32 %v693, %v751
        %v753 = vsub.f32 1.0, %v752
        %v754 = vmul.f32 %v751, %v753
        %v755 = vadd.f32 %v751, %v754
        %vm756 = vweird.f32 %v693
        %vm757 = vweird.f32 %v751
        %vm758 = vmor %vm756, %vm757
        %v759 = vsel %vm758, %v751, %v755
        %v760 = vand.u32 2147483647, %v693
        %vm761 = vcmp.eq.f32.partialorder %v760, 8.507059e+37
        %v762 = vand.u32 %v693, 2147483648
        %v763 = vor.u32 1.1754944e-38, %v762
        %v764 = vsel %vm761, %v763, %v759
        %v765 = vrcp.pop %v694
        %v766 = vmul.f32 %v694, %v765
        %v767 = vsub.f32 1.0, %v766
        %v768 = vmul.f32 %v765, %v767
        %v769 = vadd.f32 %v765, %v768
        %vm770 = vweird.f32 %v694
        %vm771 = vweird.f32 %v765
        %vm772 = vmor %vm770, %vm771
        %v773 = vsel %vm772, %v765, %v769
        %v774 = vand.u32 2147483647, %v694
        %vm775 = vcmp.eq.f32.partialorder %v774, 8.507059e+37
        %v776 = vand.u32 %v694, 2147483648
        %v777 = vor.u32 1.1754944e-38, %v776
        %v778 = vsel %vm775, %v777, %v773
        %v779 = vrcp.pop %v695
        %v780 = vmul.f32 %v695, %v779
        %v781 = vsub.f32 1.0, %v780
        %v782 = vmul.f32 %v779, %v781
        %v783 = vadd.f32 %v779, %v782
        %vm784 = vweird.f32 %v695
        %vm785 = vweird.f32 %v779
        %vm786 = vmor %vm784, %vm785
        %v787 = vsel %vm786, %v779, %v783
        %v788 = vand.u32 2147483647, %v695
        %vm789 = vcmp.eq.f32.partialorder %v788, 8.507059e+37
        %v790 = vand.u32 %v695, 2147483648
        %v791 = vor.u32 1.1754944e-38, %v790
        %v792 = vsel %vm789, %v791, %v787
        %v793 = vrcp.pop %v696
        %v794 = vmul.f32 %v696, %v793
        %v795 = vsub.f32 1.0, %v794
        %v796 = vmul.f32 %v793, %v795
        %v797 = vadd.f32 %v793, %v796
        %vm798 = vweird.f32 %v696
        %vm799 = vweird.f32 %v793
        %vm800 = vmor %vm798, %vm799
        %v801 = vsel %vm800, %v793, %v797
        %v802 = vand.u32 2147483647, %v696
        %vm803 = vcmp.eq.f32.partialorder %v802, 8.507059e+37
        %v804 = vand.u32 %v696, 2147483648
        %v805 = vor.u32 1.1754944e-38, %v804
        %v806 = vsel %vm803, %v805, %v801
        %v807 = vrcp.pop %v697
        %v808 = vmul.f32 %v697, %v807
        %v809 = vsub.f32 1.0, %v808
        %v810 = vmul.f32 %v807, %v809
        %v811 = vadd.f32 %v807, %v810
        %vm812 = vweird.f32 %v697
        %vm813 = vweird.f32 %v807
        %vm814 = vmor %vm812, %vm813
        %v815 = vsel %vm814, %v807, %v811
        %v816 = vand.u32 2147483647, %v697
        %vm817 = vcmp.eq.f32.partialorder %v816, 8.507059e+37
        %v818 = vand.u32 %v697, 2147483648
        %v819 = vor.u32 1.1754944e-38, %v818
        %v820 = vsel %vm817, %v819, %v815
        %v821 = vrcp.pop %v698
        %v822 = vmul.f32 %v698, %v821
        %v823 = vsub.f32 1.0, %v822
        %v824 = vmul.f32 %v821, %v823
        %v825 = vadd.f32 %v821, %v824
        %vm826 = vweird.f32 %v698
        %vm827 = vweird.f32 %v821
        %vm828 = vmor %vm826, %vm827
        %v829 = vsel %vm828, %v821, %v825
        %v830 = vand.u32 2147483647, %v698
        %vm831 = vcmp.eq.f32.partialorder %v830, 8.507059e+37
        %v832 = vand.u32 %v698, 2147483648
        %v833 = vor.u32 1.1754944e-38, %v832
        %v834 = vsel %vm831, %v833, %v829
        %v835 = vrcp.pop %v699
        %v836 = vmul.f32 %v699, %v835
        %v837 = vsub.f32 1.0, %v836
        %v838 = vmul.f32 %v835, %v837
        %v839 = vadd.f32 %v835, %v838
        %vm840 = vweird.f32 %v699
        %vm841 = vweird.f32 %v835
        %vm842 = vmor %vm840, %vm841
        %v843 = vsel %vm842, %v835, %v839
        %v844 = vand.u32 2147483647, %v699
        %vm845 = vcmp.eq.f32.partialorder %v844, 8.507059e+37
        %v846 = vand.u32 %v699, 2147483648
        %v847 = vor.u32 1.1754944e-38, %v846
        %v848 = vsel %vm845, %v847, %v843
        %v849 = vrcp.pop %v700
        %v850 = vmul.f32 %v700, %v849
        %v851 = vsub.f32 1.0, %v850
        %v852 = vmul.f32 %v849, %v851
        %v853 = vadd.f32 %v849, %v852
        %vm854 = vweird.f32 %v700
        %vm855 = vweird.f32 %v849
        %vm856 = vmor %vm854, %vm855
        %v857 = vsel %vm856, %v849, %v853
        %v858 = vand.u32 2147483647, %v700
        %vm859 = vcmp.eq.f32.partialorder %v858, 8.507059e+37
        %v860 = vand.u32 %v700, 2147483648
        %v861 = vor.u32 1.1754944e-38, %v860
        %v862 = vsel %vm859, %v861, %v857
        %v863 = vrcp.pop %v701
        %v864 = vmul.f32 %v701, %v863
        %v865 = vsub.f32 1.0, %v864
        %v866 = vmul.f32 %v863, %v865
        %v867 = vadd.f32 %v863, %v866
        %vm868 = vweird.f32 %v701
        %vm869 = vweird.f32 %v863
        %vm870 = vmor %vm868, %vm869
        %v871 = vsel %vm870, %v863, %v867
        %v872 = vand.u32 2147483647, %v701
        %vm873 = vcmp.eq.f32.partialorder %v872, 8.507059e+37
        %v874 = vand.u32 %v701, 2147483648
        %v875 = vor.u32 1.1754944e-38, %v874
        %v876 = vsel %vm873, %v875, %v871
        %v877 = vrcp.pop %v702
        %v878 = vmul.f32 %v702, %v877
        %v879 = vsub.f32 1.0, %v878
        %v880 = vmul.f32 %v877, %v879
        %v881 = vadd.f32 %v877, %v880
        %vm882 = vweird.f32 %v702
        %vm883 = vweird.f32 %v877
        %vm884 = vmor %vm882, %vm883
        %v885 = vsel %vm884, %v877, %v881
        %v886 = vand.u32 2147483647, %v702
        %vm887 = vcmp.eq.f32.partialorder %v886, 8.507059e+37
        %v888 = vand.u32 %v702, 2147483648
        %v889 = vor.u32 1.1754944e-38, %v888
        %v890 = vsel %vm887, %v889, %v885
        %v891 = vrcp.pop %v703
        %v892 = vmul.f32 %v703, %v891
        %v893 = vsub.f32 1.0, %v892
        %v894 = vmul.f32 %v891, %v893
        %v895 = vadd.f32 %v891, %v894
        %vm896 = vweird.f32 %v703
        %vm897 = vweird.f32 %v891
        %vm898 = vmor %vm896, %vm897
        %v899 = vsel %vm898, %v891, %v895
        %v900 = vand.u32 2147483647, %v703
        %vm901 = vcmp.eq.f32.partialorder %v900, 8.507059e+37
        %v902 = vand.u32 %v703, 2147483648
        %v903 = vor.u32 1.1754944e-38, %v902
        %v904 = vsel %vm901, %v903, %v899
        %v905 = vrcp.pop %v704
        %v906 = vmul.f32 %v704, %v905
        %v907 = vsub.f32 1.0, %v906
        %v908 = vmul.f32 %v905, %v907
        %v909 = vadd.f32 %v905, %v908
        %vm910 = vweird.f32 %v704
        %vm911 = vweird.f32 %v905
        %vm912 = vmor %vm910, %vm911
        %v913 = vsel %vm912, %v905, %v909
        %v914 = vand.u32 2147483647, %v704
        %vm915 = vcmp.eq.f32.partialorder %v914, 8.507059e+37
        %v916 = vand.u32 %v704, 2147483648
        %v917 = vor.u32 1.1754944e-38, %v916
        %v918 = vsel %vm915, %v917, %v913
        %v919 = vrcp.pop %v705
        %v920 = vmul.f32 %v705, %v919
        %v921 = vsub.f32 1.0, %v920
        %v922 = vmul.f32 %v919, %v921
        %v923 = vadd.f32 %v919, %v922
        %vm924 = vweird.f32 %v705
        %vm925 = vweird.f32 %v919
        %vm926 = vmor %vm924, %vm925
        %v927 = vsel %vm926, %v919, %v923
        %v928 = vand.u32 2147483647, %v705
        %vm929 = vcmp.eq.f32.partialorder %v928, 8.507059e+37
        %v930 = vand.u32 %v705, 2147483648
        %v931 = vor.u32 1.1754944e-38, %v930
        %v932 = vsel %vm929, %v931, %v927
        %v933 = vrcp.pop %v706
        %v934 = vmul.f32 %v706, %v933
        %v935 = vsub.f32 1.0, %v934
        %v936 = vmul.f32 %v933, %v935
        %v937 = vadd.f32 %v933, %v936
        %vm938 = vweird.f32 %v706
        %vm939 = vweird.f32 %v933
        %vm940 = vmor %vm938, %vm939
        %v941 = vsel %vm940, %v933, %v937
        %v942 = vand.u32 2147483647, %v706
        %vm943 = vcmp.eq.f32.partialorder %v942, 8.507059e+37
        %v944 = vand.u32 %v706, 2147483648
        %v945 = vor.u32 1.1754944e-38, %v944
        %v946 = vsel %vm943, %v945, %v941
        %v947 = vrcp.pop %v707
        %v948 = vmul.f32 %v707, %v947
        %v949 = vsub.f32 1.0, %v948
        %v950 = vmul.f32 %v947, %v949
        %v951 = vadd.f32 %v947, %v950
        %vm952 = vweird.f32 %v707
        %vm953 = vweird.f32 %v947
        %vm954 = vmor %vm952, %vm953
        %v955 = vsel %vm954, %v947, %v951
        %v956 = vand.u32 2147483647, %v707
        %vm957 = vcmp.eq.f32.partialorder %v956, 8.507059e+37
        %v958 = vand.u32 %v707, 2147483648
        %v959 = vor.u32 1.1754944e-38, %v958
        %v960 = vsel %vm957, %v959, %v955
        %v961 = vrcp.pop %v708
        %v962 = vmul.f32 %v708, %v961
        %v963 = vsub.f32 1.0, %v962
        %v964 = vmul.f32 %v961, %v963
        %v965 = vadd.f32 %v961, %v964
        %vm966 = vweird.f32 %v708
        %vm967 = vweird.f32 %v961
        %vm968 = vmor %vm966, %vm967
        %v969 = vsel %vm968, %v961, %v965
        %v970 = vand.u32 2147483647, %v708
        %vm971 = vcmp.eq.f32.partialorder %v970, 8.507059e+37
        %v972 = vand.u32 %v708, 2147483648
        %v973 = vor.u32 1.1754944e-38, %v972
        %v974 = vsel %vm971, %v973, %v969
        %v975 = vrcp.pop %v709
        %v976 = vmul.f32 %v709, %v975
        %v977 = vsub.f32 1.0, %v976
        %v978 = vmul.f32 %v975, %v977
        %v979 = vadd.f32 %v975, %v978
        %vm980 = vweird.f32 %v709
        %vm981 = vweird.f32 %v975
        %vm982 = vmor %vm980, %vm981
        %v983 = vsel %vm982, %v975, %v979
        %v984 = vand.u32 2147483647, %v709
        %vm985 = vcmp.eq.f32.partialorder %v984, 8.507059e+37
        %v986 = vand.u32 %v709, 2147483648
        %v987 = vor.u32 1.1754944e-38, %v986
        %v988 = vsel %vm985, %v987, %v983
        %v989 = vrcp.pop %v710
        %v990 = vmul.f32 %v710, %v989
        %v991 = vsub.f32 1.0, %v990
        %v992 = vmul.f32 %v989, %v991
        %v993 = vadd.f32 %v989, %v992
        %vm994 = vweird.f32 %v710
        %vm995 = vweird.f32 %v989
        %vm996 = vmor %vm994, %vm995
        %v997 = vsel %vm996, %v989, %v993
        %v998 = vand.u32 2147483647, %v710
        %vm999 = vcmp.eq.f32.partialorder %v998, 8.507059e+37
        %v1000 = vand.u32 %v710, 2147483648
        %v1001 = vor.u32 1.1754944e-38, %v1000
        %v1002 = vsel %vm999, %v1001, %v997
        %v1003 = vrcp.pop %v711
        %v1004 = vmul.f32 %v711, %v1003
        %v1005 = vsub.f32 1.0, %v1004
        %v1006 = vmul.f32 %v1003, %v1005
        %v1007 = vadd.f32 %v1003, %v1006
        %vm1008 = vweird.f32 %v711
        %vm1009 = vweird.f32 %v1003
        %vm1010 = vmor %vm1008, %vm1009
        %v1011 = vsel %vm1010, %v1003, %v1007
        %v1012 = vand.u32 2147483647, %v711
        %vm1013 = vcmp.eq.f32.partialorder %v1012, 8.507059e+37
        %v1014 = vand.u32 %v711, 2147483648
        %v1015 = vor.u32 1.1754944e-38, %v1014
        %v1016 = vsel %vm1013, %v1015, %v1011
        %v1017 = vrcp.pop %v712
        %v1018 = vmul.f32 %v712, %v1017
        %v1019 = vsub.f32 1.0, %v1018
        %v1020 = vmul.f32 %v1017, %v1019
        %v1021 = vadd.f32 %v1017, %v1020
        %vm1022 = vweird.f32 %v712
        %vm1023 = vweird.f32 %v1017
        %vm1024 = vmor %vm1022, %vm1023
        %v1025 = vsel %vm1024, %v1017, %v1021
        %v1026 = vand.u32 2147483647, %v712
        %vm1027 = vcmp.eq.f32.partialorder %v1026, 8.507059e+37
        %v1028 = vand.u32 %v712, 2147483648
        %v1029 = vor.u32 1.1754944e-38, %v1028
        %v1030 = vsel %vm1027, %v1029, %v1025
        %v1031 = vrcp.pop %v713
        %v1032 = vmul.f32 %v713, %v1031
        %v1033 = vsub.f32 1.0, %v1032
        %v1034 = vmul.f32 %v1031, %v1033
        %v1035 = vadd.f32 %v1031, %v1034
        %vm1036 = vweird.f32 %v713
        %vm1037 = vweird.f32 %v1031
        %vm1038 = vmor %vm1036, %vm1037
        %v1039 = vsel %vm1038, %v1031, %v1035
        %v1040 = vand.u32 2147483647, %v713
        %vm1041 = vcmp.eq.f32.partialorder %v1040, 8.507059e+37
        %v1042 = vand.u32 %v713, 2147483648
        %v1043 = vor.u32 1.1754944e-38, %v1042
        %v1044 = vsel %vm1041, %v1043, %v1039
        %v1045 = vrcp.pop %v714
        %v1046 = vmul.f32 %v714, %v1045
        %v1047 = vsub.f32 1.0, %v1046
        %v1048 = vmul.f32 %v1045, %v1047
        %v1049 = vadd.f32 %v1045, %v1048
        %vm1050 = vweird.f32 %v714
        %vm1051 = vweird.f32 %v1045
        %vm1052 = vmor %vm1050, %vm1051
        %v1053 = vsel %vm1052, %v1045, %v1049
        %v1054 = vand.u32 2147483647, %v714
        %vm1055 = vcmp.eq.f32.partialorder %v1054, 8.507059e+37
        %v1056 = vand.u32 %v714, 2147483648
        %v1057 = vor.u32 1.1754944e-38, %v1056
        %v1058 = vsel %vm1055, %v1057, %v1053
        %v1059 = vrcp.pop %v715
        %v1060 = vmul.f32 %v715, %v1059
        %v1061 = vsub.f32 1.0, %v1060
        %v1062 = vmul.f32 %v1059, %v1061
        %v1063 = vadd.f32 %v1059, %v1062
        %vm1064 = vweird.f32 %v715
        %vm1065 = vweird.f32 %v1059
        %vm1066 = vmor %vm1064, %vm1065
        %v1067 = vsel %vm1066, %v1059, %v1063
        %v1068 = vand.u32 2147483647, %v715
        %vm1069 = vcmp.eq.f32.partialorder %v1068, 8.507059e+37
        %v1070 = vand.u32 %v715, 2147483648
        %v1071 = vor.u32 1.1754944e-38, %v1070
        %v1072 = vsel %vm1069, %v1071, %v1067
        %v1073 = vrcp.pop %v716
        %v1074 = vmul.f32 %v716, %v1073
        %v1075 = vsub.f32 1.0, %v1074
        %v1076 = vmul.f32 %v1073, %v1075
        %v1077 = vadd.f32 %v1073, %v1076
        %vm1078 = vweird.f32 %v716
        %vm1079 = vweird.f32 %v1073
        %vm1080 = vmor %vm1078, %vm1079
        %v1081 = vsel %vm1080, %v1073, %v1077
        %v1082 = vand.u32 2147483647, %v716
        %vm1083 = vcmp.eq.f32.partialorder %v1082, 8.507059e+37
        %v1084 = vand.u32 %v716, 2147483648
        %v1085 = vor.u32 1.1754944e-38, %v1084
        %v1086 = vsel %vm1083, %v1085, %v1081
        %v1087 = vrcp.pop %v717
        %v1088 = vmul.f32 %v717, %v1087
        %v1089 = vsub.f32 1.0, %v1088
        %v1090 = vmul.f32 %v1087, %v1089
        %v1091 = vadd.f32 %v1087, %v1090
        %vm1092 = vweird.f32 %v717
        %vm1093 = vweird.f32 %v1087
        %vm1094 = vmor %vm1092, %vm1093
        %v1095 = vsel %vm1094, %v1087, %v1091
        %v1096 = vand.u32 2147483647, %v717
        %vm1097 = vcmp.eq.f32.partialorder %v1096, 8.507059e+37
        %v1098 = vand.u32 %v717, 2147483648
        %v1099 = vor.u32 1.1754944e-38, %v1098
        %v1100 = vsel %vm1097, %v1099, %v1095
        %v1101 = vrcp.pop %v718
        %v1102 = vmul.f32 %v718, %v1101
        %v1103 = vsub.f32 1.0, %v1102
        %v1104 = vmul.f32 %v1101, %v1103
        %v1105 = vadd.f32 %v1101, %v1104
        %vm1106 = vweird.f32 %v718
        %vm1107 = vweird.f32 %v1101
        %vm1108 = vmor %vm1106, %vm1107
        %v1109 = vsel %vm1108, %v1101, %v1105
        %v1110 = vand.u32 2147483647, %v718
        %vm1111 = vcmp.eq.f32.partialorder %v1110, 8.507059e+37
        %v1112 = vand.u32 %v718, 2147483648
        %v1113 = vor.u32 1.1754944e-38, %v1112
        %v1114 = vsel %vm1111, %v1113, %v1109
        %v1115 = vrcp.pop %v719
        %v1116 = vmul.f32 %v719, %v1115
        %v1117 = vsub.f32 1.0, %v1116
        %v1118 = vmul.f32 %v1115, %v1117
        %v1119 = vadd.f32 %v1115, %v1118
        %vm1120 = vweird.f32 %v719
        %vm1121 = vweird.f32 %v1115
        %vm1122 = vmor %vm1120, %vm1121
        %v1123 = vsel %vm1122, %v1115, %v1119
        %v1124 = vand.u32 2147483647, %v719
        %vm1125 = vcmp.eq.f32.partialorder %v1124, 8.507059e+37
        %v1126 = vand.u32 %v719, 2147483648
        %v1127 = vor.u32 1.1754944e-38, %v1126
        %v1128 = vsel %vm1125, %v1127, %v1123
        %v1129 = vrcp.pop %v720
        %v1130 = vmul.f32 %v720, %v1129
        %v1131 = vsub.f32 1.0, %v1130
        %v1132 = vmul.f32 %v1129, %v1131
        %v1133 = vadd.f32 %v1129, %v1132
        %vm1134 = vweird.f32 %v720
        %vm1135 = vweird.f32 %v1129
        %vm1136 = vmor %vm1134, %vm1135
        %v1137 = vsel %vm1136, %v1129, %v1133
        %v1138 = vand.u32 2147483647, %v720
        %vm1139 = vcmp.eq.f32.partialorder %v1138, 8.507059e+37
        %v1140 = vand.u32 %v720, 2147483648
        %v1141 = vor.u32 1.1754944e-38, %v1140
        %v1142 = vsel %vm1139, %v1141, %v1137
        %v1143 = vrcp.pop %v721
        %v1144 = vmul.f32 %v721, %v1143
        %v1145 = vsub.f32 1.0, %v1144
        %v1146 = vmul.f32 %v1143, %v1145
        %v1147 = vadd.f32 %v1143, %v1146
        %vm1148 = vweird.f32 %v721
        %vm1149 = vweird.f32 %v1143
        %vm1150 = vmor %vm1148, %vm1149
        %v1151 = vsel %vm1150, %v1143, %v1147
        %v1152 = vand.u32 2147483647, %v721
        %vm1153 = vcmp.eq.f32.partialorder %v1152, 8.507059e+37
        %v1154 = vand.u32 %v721, 2147483648
        %v1155 = vor.u32 1.1754944e-38, %v1154
        %v1156 = vsel %vm1153, %v1155, %v1151
        %v1157 = vrcp.pop %v722
        %v1158 = vmul.f32 %v722, %v1157
        %v1159 = vsub.f32 1.0, %v1158
        %v1160 = vmul.f32 %v1157, %v1159
        %v1161 = vadd.f32 %v1157, %v1160
        %vm1162 = vweird.f32 %v722
        %vm1163 = vweird.f32 %v1157
        %vm1164 = vmor %vm1162, %vm1163
        %v1165 = vsel %vm1164, %v1157, %v1161
        %v1166 = vand.u32 2147483647, %v722
        %vm1167 = vcmp.eq.f32.partialorder %v1166, 8.507059e+37
        %v1168 = vand.u32 %v722, 2147483648
        %v1169 = vor.u32 1.1754944e-38, %v1168
        %v1170 = vsel %vm1167, %v1169, %v1165
        %v1171 = vmul.f32 %v659, %v736
        %v1172 = vmul.f32 %v660, %v750
        %v1173 = vmul.f32 %v661, %v764
        %v1174 = vmul.f32 %v662, %v778
        %v1175 = vmul.f32 %v663, %v792
        %v1176 = vmul.f32 %v664, %v806
        %v1177 = vmul.f32 %v665, %v820
        %v1178 = vmul.f32 %v666, %v834
        %v1179 = vmul.f32 %v667, %v848
        %v1180 = vmul.f32 %v668, %v862
        %v1181 = vmul.f32 %v669, %v876
        %v1182 = vmul.f32 %v670, %v890
        %v1183 = vmul.f32 %v671, %v904
        %v1184 = vmul.f32 %v672, %v918
        %v1185 = vmul.f32 %v673, %v932
        %v1186 = vmul.f32 %v674, %v946
        %v1187 = vmul.f32 %v675, %v960
        %v1188 = vmul.f32 %v676, %v974
        %v1189 = vmul.f32 %v677, %v988
        %v1190 = vmul.f32 %v678, %v1002
        %v1191 = vmul.f32 %v679, %v1016
        %v1192 = vmul.f32 %v680, %v1030
        %v1193 = vmul.f32 %v681, %v1044
        %v1194 = vmul.f32 %v682, %v1058
        %v1195 = vmul.f32 %v683, %v1072
        %v1196 = vmul.f32 %v684, %v1086
        %v1197 = vmul.f32 %v685, %v1100
        %v1198 = vmul.f32 %v686, %v1114
        %v1199 = vmul.f32 %v687, %v1128
        %v1200 = vmul.f32 %v688, %v1142
        %v1201 = vmul.f32 %v689, %v1156
        %v1202 = vmul.f32 %v690, %v1170
        %vm1203 = vcmp.gt.f32.partialorder %v451, 30.0
        %vm1204 = vcmp.gt.f32.partialorder %v516, 30.0
        %vm1205 = vcmp.gt.f32.partialorder %v454, 30.0
        %vm1206 = vcmp.gt.f32.partialorder %v519, 30.0
        %vm1207 = vcmp.gt.f32.partialorder %v457, 30.0
        %vm1208 = vcmp.gt.f32.partialorder %v522, 30.0
        %vm1209 = vcmp.gt.f32.partialorder %v460, 30.0
        %vm1210 = vcmp.gt.f32.partialorder %v525, 30.0
        %vm1211 = vcmp.gt.f32.partialorder %v463, 30.0
        %vm1212 = vcmp.gt.f32.partialorder %v528, 30.0
        %vm1213 = vcmp.gt.f32.partialorder %v466, 30.0
        %vm1214 = vcmp.gt.f32.partialorder %v531, 30.0
        %vm1215 = vcmp.gt.f32.partialorder %v469, 30.0
        %vm1216 = vcmp.gt.f32.partialorder %v534, 30.0
        %vm1217 = vcmp.gt.f32.partialorder %v472, 30.0
        %vm1218 = vcmp.gt.f32.partialorder %v537, 30.0
        %vm1219 = vcmp.gt.f32.partialorder %v475, 30.0
        %vm1220 = vcmp.gt.f32.partialorder %v540, 30.0
        %vm1221 = vcmp.gt.f32.partialorder %v478, 30.0
        %vm1222 = vcmp.gt.f32.partialorder %v543, 30.0
        %vm1223 = vcmp.gt.f32.partialorder %v481, 30.0
        %vm1224 = vcmp.gt.f32.partialorder %v546, 30.0
        %vm1225 = vcmp.gt.f32.partialorder %v484, 30.0
        %vm1226 = vcmp.gt.f32.partialorder %v549, 30.0
        %vm1227 = vcmp.gt.f32.partialorder %v487, 30.0
        %vm1228 = vcmp.gt.f32.partialorder %v552, 30.0
        %vm1229 = vcmp.gt.f32.partialorder %v490, 30.0
        %vm1230 = vcmp.gt.f32.partialorder %v555, 30.0
        %vm1231 = vcmp.gt.f32.partialorder %v493, 30.0
        %vm1232 = vcmp.gt.f32.partialorder %v558, 30.0
        %vm1233 = vcmp.gt.f32.partialorder %v496, 30.0
        %vm1234 = vcmp.gt.f32.partialorder %v561, 30.0
        %v1235 = vsel %vm1203, 1.0, %v1171
        %v1236 = vsel %vm1204, 1.0, %v1172
        %v1237 = vsel %vm1205, 1.0, %v1173
        %v1238 = vsel %vm1206, 1.0, %v1174
        %v1239 = vsel %vm1207, 1.0, %v1175
        %v1240 = vsel %vm1208, 1.0, %v1176
        %v1241 = vsel %vm1209, 1.0, %v1177
        %v1242 = vsel %vm1210, 1.0, %v1178
        %v1243 = vsel %vm1211, 1.0, %v1179
        %v1244 = vsel %vm1212, 1.0, %v1180
        %v1245 = vsel %vm1213, 1.0, %v1181
        %v1246 = vsel %vm1214, 1.0, %v1182
        %v1247 = vsel %vm1215, 1.0, %v1183
        %v1248 = vsel %vm1216, 1.0, %v1184
        %v1249 = vsel %vm1217, 1.0, %v1185
        %v1250 = vsel %vm1218, 1.0, %v1186
        %v1251 = vsel %vm1219, 1.0, %v1187
        %v1252 = vsel %vm1220, 1.0, %v1188
        %v1253 = vsel %vm1221, 1.0, %v1189
        %v1254 = vsel %vm1222, 1.0, %v1190
        %v1255 = vsel %vm1223, 1.0, %v1191
        %v1256 = vsel %vm1224, 1.0, %v1192
        %v1257 = vsel %vm1225, 1.0, %v1193
        %v1258 = vsel %vm1226, 1.0, %v1194
        %v1259 = vsel %vm1227, 1.0, %v1195
        %v1260 = vsel %vm1228, 1.0, %v1196
        %v1261 = vsel %vm1229, 1.0, %v1197
        %v1262 = vsel %vm1230, 1.0, %v1198
        %v1263 = vsel %vm1231, 1.0, %v1199
        %v1264 = vsel %vm1232, 1.0, %v1200
        %v1265 = vsel %vm1233, 1.0, %v1201
        %v1266 = vsel %vm1234, 1.0, %v1202
        %v1267 = vmul.f32 %v451, %v1235
        %v1268 = vmul.f32 %v516, %v1236
        %v1269 = vmul.f32 %v454, %v1237
        %v1270 = vmul.f32 %v519, %v1238
        %v1271 = vmul.f32 %v457, %v1239
        %v1272 = vmul.f32 %v522, %v1240
        %v1273 = vmul.f32 %v460, %v1241
        %v1274 = vmul.f32 %v525, %v1242
        %v1275 = vmul.f32 %v463, %v1243
        %v1276 = vmul.f32 %v528, %v1244
        %v1277 = vmul.f32 %v466, %v1245
        %v1278 = vmul.f32 %v531, %v1246
        %v1279 = vmul.f32 %v469, %v1247
        %v1280 = vmul.f32 %v534, %v1248
        %v1281 = vmul.f32 %v472, %v1249
        %v1282 = vmul.f32 %v537, %v1250
        %v1283 = vmul.f32 %v475, %v1251
        %v1284 = vmul.f32 %v540, %v1252
        %v1285 = vmul.f32 %v478, %v1253
        %v1286 = vmul.f32 %v543, %v1254
        %v1287 = vmul.f32 %v481, %v1255
        %v1288 = vmul.f32 %v546, %v1256
        %v1289 = vmul.f32 %v484, %v1257
        %v1290 = vmul.f32 %v549, %v1258
        %v1291 = vmul.f32 %v487, %v1259
        %v1292 = vmul.f32 %v552, %v1260
        %v1293 = vmul.f32 %v490, %v1261
        %v1294 = vmul.f32 %v555, %v1262
        %v1295 = vmul.f32 %v493, %v1263
        %v1296 = vmul.f32 %v558, %v1264
        %v1297 = vmul.f32 %v496, %v1265
        %v1298 = vmul.f32 %v561, %v1266
        %v1299 = vld [vmem:[%s3] sm:$0xff]
        %v1300 = vld [vmem:[%s3 + $0x8] sm:$0xff]
        %v1301 = vld [vmem:[%s3 + $0x10] sm:$0xff]
        %v1302 = vld [vmem:[%s3 + $0x18] sm:$0xff]
        %v1303 = vld [vmem:[%s3 + $0x20] sm:$0xff]
        %v1304 = vld [vmem:[%s3 + $0x28] sm:$0xff]
        %v1305 = vld [vmem:[%s3 + $0x30] sm:$0xff]
        %v1306 = vld [vmem:[%s3 + $0x38] sm:$0xff]
        %v1307 = vld [vmem:[%s3 + $0x40] sm:$0xff]
        %v1308 = vld [vmem:[%s3 + $0x48] sm:$0xff]
        %v1309 = vld [vmem:[%s3 + $0x50] sm:$0xff]
        %v1310 = vld [vmem:[%s3 + $0x58] sm:$0xff]
        %v1311 = vld [vmem:[%s3 + $0x60] sm:$0xff]
        %v1312 = vld [vmem:[%s3 + $0x68] sm:$0xff]
        %v1313 = vld [vmem:[%s3 + $0x70] sm:$0xff]
        %v1314 = vld [vmem:[%s3 + $0x78] sm:$0xff]
        %v1315 = vld [vmem:[%s3 + $0x80] sm:$0xff]
        %v1316 = vld [vmem:[%s3 + $0x88] sm:$0xff]
        %v1317 = vld [vmem:[%s3 + $0x90] sm:$0xff]
        %v1318 = vld [vmem:[%s3 + $0x98] sm:$0xff]
        %v1319 = vld [vmem:[%s3 + $0xa0] sm:$0xff]
        %v1320 = vld [vmem:[%s3 + $0xa8] sm:$0xff]
        %v1321 = vld [vmem:[%s3 + $0xb0] sm:$0xff]
        %v1322 = vld [vmem:[%s3 + $0xb8] sm:$0xff]
        %v1323 = vld [vmem:[%s3 + $0xc0] sm:$0xff]
        %v1324 = vld [vmem:[%s3 + $0xc8] sm:$0xff]
        %v1325 = vld [vmem:[%s3 + $0xd0] sm:$0xff]
        %v1326 = vld [vmem:[%s3 + $0xd8] sm:$0xff]
        %v1327 = vld [vmem:[%s3 + $0xe0] sm:$0xff]
        %v1328 = vld [vmem:[%s3 + $0xe8] sm:$0xff]
        %v1329 = vld [vmem:[%s3 + $0xf0] sm:$0xff]
        %v1330 = vld [vmem:[%s3 + $0xf8] sm:$0xff]
        %v1331 = vld [vmem:[%s4] sm:$0x1]
        %v1333 = vperm.slane %v1331, 0
        %1335 = vmatpush.msra.mxu0 %v1314
        %1336 = vmatpush.msra.mxu0 %v1313
        %1337 = vmatpush.msra.mxu0 %v1312
        %1338 = vmatpush.msra.mxu0 %v1311
        %1339 = vmatpush.msra.mxu0 %v1310
        %1340 = vmatpush.msra.mxu0 %v1309
        %1341 = vmatpush.msra.mxu0 %v1308
        %1342 = vmatpush.msra.mxu0 %v1307
        %1343 = vmatpush.msra.mxu0 %v1306
        %1344 = vmatpush.msra.mxu0 %v1305
        %1345 = vmatpush.msra.mxu0 %v1304
        %1346 = vmatpush.msra.mxu0 %v1303
        %1347 = vmatpush.msra.mxu0 %v1302
        %1348 = vmatpush.msra.mxu0 %v1301
        %1349 = vmatpush.msra.mxu0 %v1300
        %1350 = vmatpush.msra.mxu0 %v1299
        %1351 = vmatmul.f32.gmra.mxu0 %v1267
        %v1352 = vpop.f32.mrf.mxu0
        %v1353 = vadd.f32 %v1333, %v1352
        %1354 = vmatmul.f32.gmra.mxu0 %v1269
        %v1355 = vpop.f32.mrf.mxu0
        %v1356 = vadd.f32 %v1333, %v1355
        %1357 = vmatmul.f32.gmra.mxu0 %v1271
        %v1358 = vpop.f32.mrf.mxu0
        %v1359 = vadd.f32 %v1333, %v1358
        %1360 = vmatmul.f32.gmra.mxu0 %v1273
        %v1361 = vpop.f32.mrf.mxu0
        %v1362 = vadd.f32 %v1333, %v1361
        %1363 = vmatmul.f32.gmra.mxu0 %v1275
        %v1364 = vpop.f32.mrf.mxu0
        %v1365 = vadd.f32 %v1333, %v1364
        %1366 = vmatmul.f32.gmra.mxu0 %v1277
        %v1367 = vpop.f32.mrf.mxu0
        %v1368 = vadd.f32 %v1333, %v1367
        %1369 = vmatmul.f32.gmra.mxu0 %v1279
        %v1370 = vpop.f32.mrf.mxu0
        %v1371 = vadd.f32 %v1333, %v1370
        %1372 = vmatmul.f32.gmra.mxu0 %v1281
        %v1373 = vpop.f32.mrf.mxu0
        %v1374 = vadd.f32 %v1333, %v1373
        %1375 = vmatmul.f32.gmra.mxu0 %v1283
        %v1376 = vpop.f32.mrf.mxu0
        %v1377 = vadd.f32 %v1333, %v1376
        %1378 = vmatmul.f32.gmra.mxu0 %v1285
        %v1379 = vpop.f32.mrf.mxu0
        %v1380 = vadd.f32 %v1333, %v1379
        %1381 = vmatmul.f32.gmra.mxu0 %v1287
        %v1382 = vpop.f32.mrf.mxu0
        %v1383 = vadd.f32 %v1333, %v1382
        %1384 = vmatmul.f32.gmra.mxu0 %v1289
        %v1385 = vpop.f32.mrf.mxu0
        %v1386 = vadd.f32 %v1333, %v1385
        %1387 = vmatmul.f32.gmra.mxu0 %v1291
        %v1388 = vpop.f32.mrf.mxu0
        %v1389 = vadd.f32 %v1333, %v1388
        %1390 = vmatmul.f32.gmra.mxu0 %v1293
        %v1391 = vpop.f32.mrf.mxu0
        %v1392 = vadd.f32 %v1333, %v1391
        %1393 = vmatmul.f32.gmra.mxu0 %v1295
        %v1394 = vpop.f32.mrf.mxu0
        %v1395 = vadd.f32 %v1333, %v1394
        %1396 = vmatmul.f32.gmra.mxu0 %v1297
        %v1397 = vpop.f32.mrf.mxu0
        %v1398 = vadd.f32 %v1333, %v1397
        %1399 = vdwg.mxu0
        %1400 = vmatpush.msra.mxu0 %v1330
        %1401 = vmatpush.msra.mxu0 %v1329
        %1402 = vmatpush.msra.mxu0 %v1328
        %1403 = vmatpush.msra.mxu0 %v1327
        %1404 = vmatpush.msra.mxu0 %v1326
        %1405 = vmatpush.msra.mxu0 %v1325
        %1406 = vmatpush.msra.mxu0 %v1324
        %1407 = vmatpush.msra.mxu0 %v1323
        %1408 = vmatpush.msra.mxu0 %v1322
        %1409 = vmatpush.msra.mxu0 %v1321
        %1410 = vmatpush.msra.mxu0 %v1320
        %1411 = vmatpush.msra.mxu0 %v1319
        %1412 = vmatpush.msra.mxu0 %v1318
        %1413 = vmatpush.msra.mxu0 %v1317
        %1414 = vmatpush.msra.mxu0 %v1316
        %1415 = vmatpush.msra.mxu0 %v1315
        %1416 = vmatmul.f32.gmra.mxu0 %v1268
        %v1417 = vpop.f32.mrf.mxu0
        %v1418 = vadd.f32 %v1353, %v1417
        %1419 = vmatmul.f32.gmra.mxu0 %v1270
        %v1420 = vpop.f32.mrf.mxu0
        %v1421 = vadd.f32 %v1356, %v1420
        %1422 = vmatmul.f32.gmra.mxu0 %v1272
        %v1423 = vpop.f32.mrf.mxu0
        %v1424 = vadd.f32 %v1359, %v1423
        %1425 = vmatmul.f32.gmra.mxu0 %v1274
        %v1426 = vpop.f32.mrf.mxu0
        %v1427 = vadd.f32 %v1362, %v1426
        %1428 = vmatmul.f32.gmra.mxu0 %v1276
        %v1429 = vpop.f32.mrf.mxu0
        %v1430 = vadd.f32 %v1365, %v1429
        %1431 = vmatmul.f32.gmra.mxu0 %v1278
        %v1432 = vpop.f32.mrf.mxu0
        %v1433 = vadd.f32 %v1368, %v1432
        %1434 = vmatmul.f32.gmra.mxu0 %v1280
        %v1435 = vpop.f32.mrf.mxu0
        %v1436 = vadd.f32 %v1371, %v1435
        %1437 = vmatmul.f32.gmra.mxu0 %v1282
        %v1438 = vpop.f32.mrf.mxu0
        %v1439 = vadd.f32 %v1374, %v1438
        %1440 = vmatmul.f32.gmra.mxu0 %v1284
        %v1441 = vpop.f32.mrf.mxu0
        %v1442 = vadd.f32 %v1377, %v1441
        %1443 = vmatmul.f32.gmra.mxu0 %v1286
        %v1444 = vpop.f32.mrf.mxu0
        %v1445 = vadd.f32 %v1380, %v1444
        %1446 = vmatmul.f32.gmra.mxu0 %v1288
        %v1447 = vpop.f32.mrf.mxu0
        %v1448 = vadd.f32 %v1383, %v1447
        %1449 = vmatmul.f32.gmra.mxu0 %v1290
        %v1450 = vpop.f32.mrf.mxu0
        %v1451 = vadd.f32 %v1386, %v1450
        %1452 = vmatmul.f32.gmra.mxu0 %v1292
        %v1453 = vpop.f32.mrf.mxu0
        %v1454 = vadd.f32 %v1389, %v1453
        %1455 = vmatmul.f32.gmra.mxu0 %v1294
        %v1456 = vpop.f32.mrf.mxu0
        %v1457 = vadd.f32 %v1392, %v1456
        %1458 = vmatmul.f32.gmra.mxu0 %v1296
        %v1459 = vpop.f32.mrf.mxu0
        %v1460 = vadd.f32 %v1395, %v1459
        %1461 = vmatmul.f32.gmra.mxu0 %v1298
        %v1462 = vpop.f32.mrf.mxu0
        %v1463 = vadd.f32 %v1398, %v1462
        %1464 = vdwg.mxu0
        %v1465 = vmul.f32 %v1418, 1.442695
        %v1466 = vpow.pop %v1465
        %v1467 = vmul.f32 %v1421, 1.442695
        %v1468 = vpow.pop %v1467
        %v1469 = vmul.f32 %v1424, 1.442695
        %v1470 = vpow.pop %v1469
        %v1471 = vmul.f32 %v1427, 1.442695
        %v1472 = vpow.pop %v1471
        %v1473 = vmul.f32 %v1430, 1.442695
        %v1474 = vpow.pop %v1473
        %v1475 = vmul.f32 %v1433, 1.442695
        %v1476 = vpow.pop %v1475
        %v1477 = vmul.f32 %v1436, 1.442695
        %v1478 = vpow.pop %v1477
        %v1479 = vmul.f32 %v1439, 1.442695
        %v1480 = vpow.pop %v1479
        %v1481 = vmul.f32 %v1442, 1.442695
        %v1482 = vpow.pop %v1481
        %v1483 = vmul.f32 %v1445, 1.442695
        %v1484 = vpow.pop %v1483
        %v1485 = vmul.f32 %v1448, 1.442695
        %v1486 = vpow.pop %v1485
        %v1487 = vmul.f32 %v1451, 1.442695
        %v1488 = vpow.pop %v1487
        %v1489 = vmul.f32 %v1454, 1.442695
        %v1490 = vpow.pop %v1489
        %v1491 = vmul.f32 %v1457, 1.442695
        %v1492 = vpow.pop %v1491
        %v1493 = vmul.f32 %v1460, 1.442695
        %v1494 = vpow.pop %v1493
        %v1495 = vmul.f32 %v1463, 1.442695
        %v1496 = vpow.pop %v1495
        %v1497 = vadd.f32 %v1466, 2.0
        %v1498 = vadd.f32 %v1468, 2.0
        %v1499 = vadd.f32 %v1470, 2.0
        %v1500 = vadd.f32 %v1472, 2.0
        %v1501 = vadd.f32 %v1474, 2.0
        %v1502 = vadd.f32 %v1476, 2.0
        %v1503 = vadd.f32 %v1478, 2.0
        %v1504 = vadd.f32 %v1480, 2.0
        %v1505 = vadd.f32 %v1482, 2.0
        %v1506 = vadd.f32 %v1484, 2.0
        %v1507 = vadd.f32 %v1486, 2.0
        %v1508 = vadd.f32 %v1488, 2.0
        %v1509 = vadd.f32 %v1490, 2.0
        %v1510 = vadd.f32 %v1492, 2.0
        %v1511 = vadd.f32 %v1494, 2.0
        %v1512 = vadd.f32 %v1496, 2.0
        %v1513 = vmul.f32 %v1466, %v1497
        %v1514 = vmul.f32 %v1468, %v1498
        %v1515 = vmul.f32 %v1470, %v1499
        %v1516 = vmul.f32 %v1472, %v1500
        %v1517 = vmul.f32 %v1474, %v1501
        %v1518 = vmul.f32 %v1476, %v1502
        %v1519 = vmul.f32 %v1478, %v1503
        %v1520 = vmul.f32 %v1480, %v1504
        %v1521 = vmul.f32 %v1482, %v1505
        %v1522 = vmul.f32 %v1484, %v1506
        %v1523 = vmul.f32 %v1486, %v1507
        %v1524 = vmul.f32 %v1488, %v1508
        %v1525 = vmul.f32 %v1490, %v1509
        %v1526 = vmul.f32 %v1492, %v1510
        %v1527 = vmul.f32 %v1494, %v1511
        %v1528 = vmul.f32 %v1496, %v1512
        %v1529 = vadd.f32 %v1513, 2.0
        %v1530 = vadd.f32 %v1514, 2.0
        %v1531 = vadd.f32 %v1515, 2.0
        %v1532 = vadd.f32 %v1516, 2.0
        %v1533 = vadd.f32 %v1517, 2.0
        %v1534 = vadd.f32 %v1518, 2.0
        %v1535 = vadd.f32 %v1519, 2.0
        %v1536 = vadd.f32 %v1520, 2.0
        %v1537 = vadd.f32 %v1521, 2.0
        %v1538 = vadd.f32 %v1522, 2.0
        %v1539 = vadd.f32 %v1523, 2.0
        %v1540 = vadd.f32 %v1524, 2.0
        %v1541 = vadd.f32 %v1525, 2.0
        %v1542 = vadd.f32 %v1526, 2.0
        %v1543 = vadd.f32 %v1527, 2.0
        %v1544 = vadd.f32 %v1528, 2.0
        %v1545 = vrcp.pop %v1529
        %v1546 = vmul.f32 %v1529, %v1545
        %v1547 = vsub.f32 1.0, %v1546
        %v1548 = vmul.f32 %v1545, %v1547
        %v1549 = vadd.f32 %v1545, %v1548
        %vm1550 = vweird.f32 %v1529
        %vm1551 = vweird.f32 %v1545
        %vm1552 = vmor %vm1550, %vm1551
        %v1553 = vsel %vm1552, %v1545, %v1549
        %v1554 = vand.u32 2147483647, %v1529
        %vm1555 = vcmp.eq.f32.partialorder %v1554, 8.507059e+37
        %v1556 = vand.u32 %v1529, 2147483648
        %v1557 = vor.u32 1.1754944e-38, %v1556
        %v1558 = vsel %vm1555, %v1557, %v1553
        %v1559 = vrcp.pop %v1530
        %v1560 = vmul.f32 %v1530, %v1559
        %v1561 = vsub.f32 1.0, %v1560
        %v1562 = vmul.f32 %v1559, %v1561
        %v1563 = vadd.f32 %v1559, %v1562
        %vm1564 = vweird.f32 %v1530
        %vm1565 = vweird.f32 %v1559
        %vm1566 = vmor %vm1564, %vm1565
        %v1567 = vsel %vm1566, %v1559, %v1563
        %v1568 = vand.u32 2147483647, %v1530
        %vm1569 = vcmp.eq.f32.partialorder %v1568, 8.507059e+37
        %v1570 = vand.u32 %v1530, 2147483648
        %v1571 = vor.u32 1.1754944e-38, %v1570
        %v1572 = vsel %vm1569, %v1571, %v1567
        %v1573 = vrcp.pop %v1531
        %v1574 = vmul.f32 %v1531, %v1573
        %v1575 = vsub.f32 1.0, %v1574
        %v1576 = vmul.f32 %v1573, %v1575
        %v1577 = vadd.f32 %v1573, %v1576
        %vm1578 = vweird.f32 %v1531
        %vm1579 = vweird.f32 %v1573
        %vm1580 = vmor %vm1578, %vm1579
        %v1581 = vsel %vm1580, %v1573, %v1577
        %v1582 = vand.u32 2147483647, %v1531
        %vm1583 = vcmp.eq.f32.partialorder %v1582, 8.507059e+37
        %v1584 = vand.u32 %v1531, 2147483648
        %v1585 = vor.u32 1.1754944e-38, %v1584
        %v1586 = vsel %vm1583, %v1585, %v1581
        %v1587 = vrcp.pop %v1532
        %v1588 = vmul.f32 %v1532, %v1587
        %v1589 = vsub.f32 1.0, %v1588
        %v1590 = vmul.f32 %v1587, %v1589
        %v1591 = vadd.f32 %v1587, %v1590
        %vm1592 = vweird.f32 %v1532
        %vm1593 = vweird.f32 %v1587
        %vm1594 = vmor %vm1592, %vm1593
        %v1595 = vsel %vm1594, %v1587, %v1591
        %v1596 = vand.u32 2147483647, %v1532
        %vm1597 = vcmp.eq.f32.partialorder %v1596, 8.507059e+37
        %v1598 = vand.u32 %v1532, 2147483648
        %v1599 = vor.u32 1.1754944e-38, %v1598
        %v1600 = vsel %vm1597, %v1599, %v1595
        %v1601 = vrcp.pop %v1533
        %v1602 = vmul.f32 %v1533, %v1601
        %v1603 = vsub.f32 1.0, %v1602
        %v1604 = vmul.f32 %v1601, %v1603
        %v1605 = vadd.f32 %v1601, %v1604
        %vm1606 = vweird.f32 %v1533
        %vm1607 = vweird.f32 %v1601
        %vm1608 = vmor %vm1606, %vm1607
        %v1609 = vsel %vm1608, %v1601, %v1605
        %v1610 = vand.u32 2147483647, %v1533
        %vm1611 = vcmp.eq.f32.partialorder %v1610, 8.507059e+37
        %v1612 = vand.u32 %v1533, 2147483648
        %v1613 = vor.u32 1.1754944e-38, %v1612
        %v1614 = vsel %vm1611, %v1613, %v1609
        %v1615 = vrcp.pop %v1534
        %v1616 = vmul.f32 %v1534, %v1615
        %v1617 = vsub.f32 1.0, %v1616
        %v1618 = vmul.f32 %v1615, %v1617
        %v1619 = vadd.f32 %v1615, %v1618
        %vm1620 = vweird.f32 %v1534
        %vm1621 = vweird.f32 %v1615
        %vm1622 = vmor %vm1620, %vm1621
        %v1623 = vsel %vm1622, %v1615, %v1619
        %v1624 = vand.u32 2147483647, %v1534
        %vm1625 = vcmp.eq.f32.partialorder %v1624, 8.507059e+37
        %v1626 = vand.u32 %v1534, 2147483648
        %v1627 = vor.u32 1.1754944e-38, %v1626
        %v1628 = vsel %vm1625, %v1627, %v1623
        %v1629 = vrcp.pop %v1535
        %v1630 = vmul.f32 %v1535, %v1629
        %v1631 = vsub.f32 1.0, %v1630
        %v1632 = vmul.f32 %v1629, %v1631
        %v1633 = vadd.f32 %v1629, %v1632
        %vm1634 = vweird.f32 %v1535
        %vm1635 = vweird.f32 %v1629
        %vm1636 = vmor %vm1634, %vm1635
        %v1637 = vsel %vm1636, %v1629, %v1633
        %v1638 = vand.u32 2147483647, %v1535
        %vm1639 = vcmp.eq.f32.partialorder %v1638, 8.507059e+37
        %v1640 = vand.u32 %v1535, 2147483648
        %v1641 = vor.u32 1.1754944e-38, %v1640
        %v1642 = vsel %vm1639, %v1641, %v1637
        %v1643 = vrcp.pop %v1536
        %v1644 = vmul.f32 %v1536, %v1643
        %v1645 = vsub.f32 1.0, %v1644
        %v1646 = vmul.f32 %v1643, %v1645
        %v1647 = vadd.f32 %v1643, %v1646
        %vm1648 = vweird.f32 %v1536
        %vm1649 = vweird.f32 %v1643
        %vm1650 = vmor %vm1648, %vm1649
        %v1651 = vsel %vm1650, %v1643, %v1647
        %v1652 = vand.u32 2147483647, %v1536
        %vm1653 = vcmp.eq.f32.partialorder %v1652, 8.507059e+37
        %v1654 = vand.u32 %v1536, 2147483648
        %v1655 = vor.u32 1.1754944e-38, %v1654
        %v1656 = vsel %vm1653, %v1655, %v1651
        %v1657 = vrcp.pop %v1537
        %v1658 = vmul.f32 %v1537, %v1657
        %v1659 = vsub.f32 1.0, %v1658
        %v1660 = vmul.f32 %v1657, %v1659
        %v1661 = vadd.f32 %v1657, %v1660
        %vm1662 = vweird.f32 %v1537
        %vm1663 = vweird.f32 %v1657
        %vm1664 = vmor %vm1662, %vm1663
        %v1665 = vsel %vm1664, %v1657, %v1661
        %v1666 = vand.u32 2147483647, %v1537
        %vm1667 = vcmp.eq.f32.partialorder %v1666, 8.507059e+37
        %v1668 = vand.u32 %v1537, 2147483648
        %v1669 = vor.u32 1.1754944e-38, %v1668
        %v1670 = vsel %vm1667, %v1669, %v1665
        %v1671 = vrcp.pop %v1538
        %v1672 = vmul.f32 %v1538, %v1671
        %v1673 = vsub.f32 1.0, %v1672
        %v1674 = vmul.f32 %v1671, %v1673
        %v1675 = vadd.f32 %v1671, %v1674
        %vm1676 = vweird.f32 %v1538
        %vm1677 = vweird.f32 %v1671
        %vm1678 = vmor %vm1676, %vm1677
        %v1679 = vsel %vm1678, %v1671, %v1675
        %v1680 = vand.u32 2147483647, %v1538
        %vm1681 = vcmp.eq.f32.partialorder %v1680, 8.507059e+37
        %v1682 = vand.u32 %v1538, 2147483648
        %v1683 = vor.u32 1.1754944e-38, %v1682
        %v1684 = vsel %vm1681, %v1683, %v1679
        %v1685 = vrcp.pop %v1539
        %v1686 = vmul.f32 %v1539, %v1685
        %v1687 = vsub.f32 1.0, %v1686
        %v1688 = vmul.f32 %v1685, %v1687
        %v1689 = vadd.f32 %v1685, %v1688
        %vm1690 = vweird.f32 %v1539
        %vm1691 = vweird.f32 %v1685
        %vm1692 = vmor %vm1690, %vm1691
        %v1693 = vsel %vm1692, %v1685, %v1689
        %v1694 = vand.u32 2147483647, %v1539
        %vm1695 = vcmp.eq.f32.partialorder %v1694, 8.507059e+37
        %v1696 = vand.u32 %v1539, 2147483648
        %v1697 = vor.u32 1.1754944e-38, %v1696
        %v1698 = vsel %vm1695, %v1697, %v1693
        %v1699 = vrcp.pop %v1540
        %v1700 = vmul.f32 %v1540, %v1699
        %v1701 = vsub.f32 1.0, %v1700
        %v1702 = vmul.f32 %v1699, %v1701
        %v1703 = vadd.f32 %v1699, %v1702
        %vm1704 = vweird.f32 %v1540
        %vm1705 = vweird.f32 %v1699
        %vm1706 = vmor %vm1704, %vm1705
        %v1707 = vsel %vm1706, %v1699, %v1703
        %v1708 = vand.u32 2147483647, %v1540
        %vm1709 = vcmp.eq.f32.partialorder %v1708, 8.507059e+37
        %v1710 = vand.u32 %v1540, 2147483648
        %v1711 = vor.u32 1.1754944e-38, %v1710
        %v1712 = vsel %vm1709, %v1711, %v1707
        %v1713 = vrcp.pop %v1541
        %v1714 = vmul.f32 %v1541, %v1713
        %v1715 = vsub.f32 1.0, %v1714
        %v1716 = vmul.f32 %v1713, %v1715
        %v1717 = vadd.f32 %v1713, %v1716
        %vm1718 = vweird.f32 %v1541
        %vm1719 = vweird.f32 %v1713
        %vm1720 = vmor %vm1718, %vm1719
        %v1721 = vsel %vm1720, %v1713, %v1717
        %v1722 = vand.u32 2147483647, %v1541
        %vm1723 = vcmp.eq.f32.partialorder %v1722, 8.507059e+37
        %v1724 = vand.u32 %v1541, 2147483648
        %v1725 = vor.u32 1.1754944e-38, %v1724
        %v1726 = vsel %vm1723, %v1725, %v1721
        %v1727 = vrcp.pop %v1542
        %v1728 = vmul.f32 %v1542, %v1727
        %v1729 = vsub.f32 1.0, %v1728
        %v1730 = vmul.f32 %v1727, %v1729
        %v1731 = vadd.f32 %v1727, %v1730
        %vm1732 = vweird.f32 %v1542
        %vm1733 = vweird.f32 %v1727
        %vm1734 = vmor %vm1732, %vm1733
        %v1735 = vsel %vm1734, %v1727, %v1731
        %v1736 = vand.u32 2147483647, %v1542
        %vm1737 = vcmp.eq.f32.partialorder %v1736, 8.507059e+37
        %v1738 = vand.u32 %v1542, 2147483648
        %v1739 = vor.u32 1.1754944e-38, %v1738
        %v1740 = vsel %vm1737, %v1739, %v1735
        %v1741 = vrcp.pop %v1543
        %v1742 = vmul.f32 %v1543, %v1741
        %v1743 = vsub.f32 1.0, %v1742
        %v1744 = vmul.f32 %v1741, %v1743
        %v1745 = vadd.f32 %v1741, %v1744
        %vm1746 = vweird.f32 %v1543
        %vm1747 = vweird.f32 %v1741
        %vm1748 = vmor %vm1746, %vm1747
        %v1749 = vsel %vm1748, %v1741, %v1745
        %v1750 = vand.u32 2147483647, %v1543
        %vm1751 = vcmp.eq.f32.partialorder %v1750, 8.507059e+37
        %v1752 = vand.u32 %v1543, 2147483648
        %v1753 = vor.u32 1.1754944e-38, %v1752
        %v1754 = vsel %vm1751, %v1753, %v1749
        %v1755 = vrcp.pop %v1544
        %v1756 = vmul.f32 %v1544, %v1755
        %v1757 = vsub.f32 1.0, %v1756
        %v1758 = vmul.f32 %v1755, %v1757
        %v1759 = vadd.f32 %v1755, %v1758
        %vm1760 = vweird.f32 %v1544
        %vm1761 = vweird.f32 %v1755
        %vm1762 = vmor %vm1760, %vm1761
        %v1763 = vsel %vm1762, %v1755, %v1759
        %v1764 = vand.u32 2147483647, %v1544
        %vm1765 = vcmp.eq.f32.partialorder %v1764, 8.507059e+37
        %v1766 = vand.u32 %v1544, 2147483648
        %v1767 = vor.u32 1.1754944e-38, %v1766
        %v1768 = vsel %vm1765, %v1767, %v1763
        %v1769 = vmul.f32 %v1513, %v1558
        %v1770 = vmul.f32 %v1514, %v1572
        %v1771 = vmul.f32 %v1515, %v1586
        %v1772 = vmul.f32 %v1516, %v1600
        %v1773 = vmul.f32 %v1517, %v1614
        %v1774 = vmul.f32 %v1518, %v1628
        %v1775 = vmul.f32 %v1519, %v1642
        %v1776 = vmul.f32 %v1520, %v1656
        %v1777 = vmul.f32 %v1521, %v1670
        %v1778 = vmul.f32 %v1522, %v1684
        %v1779 = vmul.f32 %v1523, %v1698
        %v1780 = vmul.f32 %v1524, %v1712
        %v1781 = vmul.f32 %v1525, %v1726
        %v1782 = vmul.f32 %v1526, %v1740
        %v1783 = vmul.f32 %v1527, %v1754
        %v1784 = vmul.f32 %v1528, %v1768
        %vm1785 = vcmp.gt.f32.partialorder %v1418, 30.0
        %vm1786 = vcmp.gt.f32.partialorder %v1421, 30.0
        %vm1787 = vcmp.gt.f32.partialorder %v1424, 30.0
        %vm1788 = vcmp.gt.f32.partialorder %v1427, 30.0
        %vm1789 = vcmp.gt.f32.partialorder %v1430, 30.0
        %vm1790 = vcmp.gt.f32.partialorder %v1433, 30.0
        %vm1791 = vcmp.gt.f32.partialorder %v1436, 30.0
        %vm1792 = vcmp.gt.f32.partialorder %v1439, 30.0
        %vm1793 = vcmp.gt.f32.partialorder %v1442, 30.0
        %vm1794 = vcmp.gt.f32.partialorder %v1445, 30.0
        %vm1795 = vcmp.gt.f32.partialorder %v1448, 30.0
        %vm1796 = vcmp.gt.f32.partialorder %v1451, 30.0
        %vm1797 = vcmp.gt.f32.partialorder %v1454, 30.0
        %vm1798 = vcmp.gt.f32.partialorder %v1457, 30.0
        %vm1799 = vcmp.gt.f32.partialorder %v1460, 30.0
        %vm1800 = vcmp.gt.f32.partialorder %v1463, 30.0
        %v1801 = vsel %vm1785, 1.0, %v1769
        %v1802 = vsel %vm1786, 1.0, %v1770
        %v1803 = vsel %vm1787, 1.0, %v1771
        %v1804 = vsel %vm1788, 1.0, %v1772
        %v1805 = vsel %vm1789, 1.0, %v1773
        %v1806 = vsel %vm1790, 1.0, %v1774
        %v1807 = vsel %vm1791, 1.0, %v1775
        %v1808 = vsel %vm1792, 1.0, %v1776
        %v1809 = vsel %vm1793, 1.0, %v1777
        %v1810 = vsel %vm1794, 1.0, %v1778
        %v1811 = vsel %vm1795, 1.0, %v1779
        %v1812 = vsel %vm1796, 1.0, %v1780
        %v1813 = vsel %vm1797, 1.0, %v1781
        %v1814 = vsel %vm1798, 1.0, %v1782
        %v1815 = vsel %vm1799, 1.0, %v1783
        %v1816 = vsel %vm1800, 1.0, %v1784
        %v1817 = vmul.f32 %v1418, %v1801
        %v1818 = vmul.f32 %v1421, %v1802
        %v1819 = vmul.f32 %v1424, %v1803
        %v1820 = vmul.f32 %v1427, %v1804
        %v1821 = vmul.f32 %v1430, %v1805
        %v1822 = vmul.f32 %v1433, %v1806
        %v1823 = vmul.f32 %v1436, %v1807
        %v1824 = vmul.f32 %v1439, %v1808
        %v1825 = vmul.f32 %v1442, %v1809
        %v1826 = vmul.f32 %v1445, %v1810
        %v1827 = vmul.f32 %v1448, %v1811
        %v1828 = vmul.f32 %v1451, %v1812
        %v1829 = vmul.f32 %v1454, %v1813
        %v1830 = vmul.f32 %v1457, %v1814
        %v1831 = vmul.f32 %v1460, %v1815
        %v1832 = vmul.f32 %v1463, %v1816
        %v1833 = vld [vmem:[%s5] sm:$0xff]
        %v1834 = vld [vmem:[%s5 + $0x8] sm:$0xff]
        %v1835 = vld [vmem:[%s5 + $0x10] sm:$0xff]
        %v1836 = vld [vmem:[%s5 + $0x18] sm:$0xff]
        %v1837 = vld [vmem:[%s5 + $0x20] sm:$0xff]
        %v1838 = vld [vmem:[%s5 + $0x28] sm:$0xff]
        %v1839 = vld [vmem:[%s5 + $0x30] sm:$0xff]
        %v1840 = vld [vmem:[%s5 + $0x38] sm:$0xff]
        %v1841 = vld [vmem:[%s5 + $0x40] sm:$0xff]
        %v1842 = vld [vmem:[%s5 + $0x48] sm:$0xff]
        %v1843 = vld [vmem:[%s5 + $0x50] sm:$0xff]
        %v1844 = vld [vmem:[%s5 + $0x58] sm:$0xff]
        %v1845 = vld [vmem:[%s5 + $0x60] sm:$0xff]
        %v1846 = vld [vmem:[%s5 + $0x68] sm:$0xff]
        %v1847 = vld [vmem:[%s5 + $0x70] sm:$0xff]
        %v1848 = vld [vmem:[%s5 + $0x78] sm:$0xff]
        %v1849 = vld [vmem:[%s6] sm:$0x1]
        %v1851 = vperm.slane %v1849, 0
        %1853 = vmatpush.msra.mxu0 %v1848
        %1854 = vmatpush.msra.mxu0 %v1847
        %1855 = vmatpush.msra.mxu0 %v1846
        %1856 = vmatpush.msra.mxu0 %v1845
        %1857 = vmatpush.msra.mxu0 %v1844
        %1858 = vmatpush.msra.mxu0 %v1843
        %1859 = vmatpush.msra.mxu0 %v1842
        %1860 = vmatpush.msra.mxu0 %v1841
        %1861 = vmatpush.msra.mxu0 %v1840
        %1862 = vmatpush.msra.mxu0 %v1839
        %1863 = vmatpush.msra.mxu0 %v1838
        %1864 = vmatpush.msra.mxu0 %v1837
        %1865 = vmatpush.msra.mxu0 %v1836
        %1866 = vmatpush.msra.mxu0 %v1835
        %1867 = vmatpush.msra.mxu0 %v1834
        %1868 = vmatpush.msra.mxu0 %v1833
        %1869 = vmatmul.f32.gmra.mxu0 %v1817
        %v1870 = vpop.f32.mrf.mxu0
        %v1871 = vadd.f32 %v1851, %v1870
        %1872 = vmatmul.f32.gmra.mxu0 %v1818
        %v1873 = vpop.f32.mrf.mxu0
        %v1874 = vadd.f32 %v1851, %v1873
        %1875 = vmatmul.f32.gmra.mxu0 %v1819
        %v1876 = vpop.f32.mrf.mxu0
        %v1877 = vadd.f32 %v1851, %v1876
        %1878 = vmatmul.f32.gmra.mxu0 %v1820
        %v1879 = vpop.f32.mrf.mxu0
        %v1880 = vadd.f32 %v1851, %v1879
        %1881 = vmatmul.f32.gmra.mxu0 %v1821
        %v1882 = vpop.f32.mrf.mxu0
        %v1883 = vadd.f32 %v1851, %v1882
        %1884 = vmatmul.f32.gmra.mxu0 %v1822
        %v1885 = vpop.f32.mrf.mxu0
        %v1886 = vadd.f32 %v1851, %v1885
        %1887 = vmatmul.f32.gmra.mxu0 %v1823
        %v1888 = vpop.f32.mrf.mxu0
        %v1889 = vadd.f32 %v1851, %v1888
        %1890 = vmatmul.f32.gmra.mxu0 %v1824
        %v1891 = vpop.f32.mrf.mxu0
        %v1892 = vadd.f32 %v1851, %v1891
        %1893 = vmatmul.f32.gmra.mxu0 %v1825
        %v1894 = vpop.f32.mrf.mxu0
        %v1895 = vadd.f32 %v1851, %v1894
        %1896 = vmatmul.f32.gmra.mxu0 %v1826
        %v1897 = vpop.f32.mrf.mxu0
        %v1898 = vadd.f32 %v1851, %v1897
        %1899 = vmatmul.f32.gmra.mxu0 %v1827
        %v1900 = vpop.f32.mrf.mxu0
        %v1901 = vadd.f32 %v1851, %v1900
        %1902 = vmatmul.f32.gmra.mxu0 %v1828
        %v1903 = vpop.f32.mrf.mxu0
        %v1904 = vadd.f32 %v1851, %v1903
        %1905 = vmatmul.f32.gmra.mxu0 %v1829
        %v1906 = vpop.f32.mrf.mxu0
        %v1907 = vadd.f32 %v1851, %v1906
        %1908 = vmatmul.f32.gmra.mxu0 %v1830
        %v1909 = vpop.f32.mrf.mxu0
        %v1910 = vadd.f32 %v1851, %v1909
        %1911 = vmatmul.f32.gmra.mxu0 %v1831
        %v1912 = vpop.f32.mrf.mxu0
        %v1913 = vadd.f32 %v1851, %v1912
        %1914 = vmatmul.f32.gmra.mxu0 %v1832
        %v1915 = vpop.f32.mrf.mxu0
        %v1916 = vadd.f32 %v1851, %v1915
        %1917 = vdwg.mxu0
        %v1918 = vmul.f32 %v1871, 1.442695
        %v1919 = vpow.pop %v1918
        %v1920 = vmul.f32 %v1874, 1.442695
        %v1921 = vpow.pop %v1920
        %v1922 = vmul.f32 %v1877, 1.442695
        %v1923 = vpow.pop %v1922
        %v1924 = vmul.f32 %v1880, 1.442695
        %v1925 = vpow.pop %v1924
        %v1926 = vmul.f32 %v1883, 1.442695
        %v1927 = vpow.pop %v1926
        %v1928 = vmul.f32 %v1886, 1.442695
        %v1929 = vpow.pop %v1928
        %v1930 = vmul.f32 %v1889, 1.442695
        %v1931 = vpow.pop %v1930
        %v1932 = vmul.f32 %v1892, 1.442695
        %v1933 = vpow.pop %v1932
        %v1934 = vmul.f32 %v1895, 1.442695
        %v1935 = vpow.pop %v1934
        %v1936 = vmul.f32 %v1898, 1.442695
        %v1937 = vpow.pop %v1936
        %v1938 = vmul.f32 %v1901, 1.442695
        %v1939 = vpow.pop %v1938
        %v1940 = vmul.f32 %v1904, 1.442695
        %v1941 = vpow.pop %v1940
        %v1942 = vmul.f32 %v1907, 1.442695
        %v1943 = vpow.pop %v1942
        %v1944 = vmul.f32 %v1910, 1.442695
        %v1945 = vpow.pop %v1944
        %v1946 = vmul.f32 %v1913, 1.442695
        %v1947 = vpow.pop %v1946
        %v1948 = vmul.f32 %v1916, 1.442695
        %v1949 = vpow.pop %v1948
        %v1950 = vadd.f32 %v1919, 2.0
        %v1951 = vadd.f32 %v1921, 2.0
        %v1952 = vadd.f32 %v1923, 2.0
        %v1953 = vadd.f32 %v1925, 2.0
        %v1954 = vadd.f32 %v1927, 2.0
        %v1955 = vadd.f32 %v1929, 2.0
        %v1956 = vadd.f32 %v1931, 2.0
        %v1957 = vadd.f32 %v1933, 2.0
        %v1958 = vadd.f32 %v1935, 2.0
        %v1959 = vadd.f32 %v1937, 2.0
        %v1960 = vadd.f32 %v1939, 2.0
        %v1961 = vadd.f32 %v1941, 2.0
        %v1962 = vadd.f32 %v1943, 2.0
        %v1963 = vadd.f32 %v1945, 2.0
        %v1964 = vadd.f32 %v1947, 2.0
        %v1965 = vadd.f32 %v1949, 2.0
        %v1966 = vmul.f32 %v1919, %v1950
        %v1967 = vmul.f32 %v1921, %v1951
        %v1968 = vmul.f32 %v1923, %v1952
        %v1969 = vmul.f32 %v1925, %v1953
        %v1970 = vmul.f32 %v1927, %v1954
        %v1971 = vmul.f32 %v1929, %v1955
        %v1972 = vmul.f32 %v1931, %v1956
        %v1973 = vmul.f32 %v1933, %v1957
        %v1974 = vmul.f32 %v1935, %v1958
        %v1975 = vmul.f32 %v1937, %v1959
        %v1976 = vmul.f32 %v1939, %v1960
        %v1977 = vmul.f32 %v1941, %v1961
        %v1978 = vmul.f32 %v1943, %v1962
        %v1979 = vmul.f32 %v1945, %v1963
        %v1980 = vmul.f32 %v1947, %v1964
        %v1981 = vmul.f32 %v1949, %v1965
        %v1982 = vadd.f32 %v1966, 2.0
        %v1983 = vadd.f32 %v1967, 2.0
        %v1984 = vadd.f32 %v1968, 2.0
        %v1985 = vadd.f32 %v1969, 2.0
        %v1986 = vadd.f32 %v1970, 2.0
        %v1987 = vadd.f32 %v1971, 2.0
        %v1988 = vadd.f32 %v1972, 2.0
        %v1989 = vadd.f32 %v1973, 2.0
        %v1990 = vadd.f32 %v1974, 2.0
        %v1991 = vadd.f32 %v1975, 2.0
        %v1992 = vadd.f32 %v1976, 2.0
        %v1993 = vadd.f32 %v1977, 2.0
        %v1994 = vadd.f32 %v1978, 2.0
        %v1995 = vadd.f32 %v1979, 2.0
        %v1996 = vadd.f32 %v1980, 2.0
        %v1997 = vadd.f32 %v1981, 2.0
        %v1998 = vrcp.pop %v1982
        %v1999 = vmul.f32 %v1982, %v1998
        %v2000 = vsub.f32 1.0, %v1999
        %v2001 = vmul.f32 %v1998, %v2000
        %v2002 = vadd.f32 %v1998, %v2001
        %vm2003 = vweird.f32 %v1982
        %vm2004 = vweird.f32 %v1998
        %vm2005 = vmor %vm2003, %vm2004
        %v2006 = vsel %vm2005, %v1998, %v2002
        %v2007 = vand.u32 2147483647, %v1982
        %vm2008 = vcmp.eq.f32.partialorder %v2007, 8.507059e+37
        %v2009 = vand.u32 %v1982, 2147483648
        %v2010 = vor.u32 1.1754944e-38, %v2009
        %v2011 = vsel %vm2008, %v2010, %v2006
        %v2012 = vrcp.pop %v1983
        %v2013 = vmul.f32 %v1983, %v2012
        %v2014 = vsub.f32 1.0, %v2013
        %v2015 = vmul.f32 %v2012, %v2014
        %v2016 = vadd.f32 %v2012, %v2015
        %vm2017 = vweird.f32 %v1983
        %vm2018 = vweird.f32 %v2012
        %vm2019 = vmor %vm2017, %vm2018
        %v2020 = vsel %vm2019, %v2012, %v2016
        %v2021 = vand.u32 2147483647, %v1983
        %vm2022 = vcmp.eq.f32.partialorder %v2021, 8.507059e+37
        %v2023 = vand.u32 %v1983, 2147483648
        %v2024 = vor.u32 1.1754944e-38, %v2023
        %v2025 = vsel %vm2022, %v2024, %v2020
        %v2026 = vrcp.pop %v1984
        %v2027 = vmul.f32 %v1984, %v2026
        %v2028 = vsub.f32 1.0, %v2027
        %v2029 = vmul.f32 %v2026, %v2028
        %v2030 = vadd.f32 %v2026, %v2029
        %vm2031 = vweird.f32 %v1984
        %vm2032 = vweird.f32 %v2026
        %vm2033 = vmor %vm2031, %vm2032
        %v2034 = vsel %vm2033, %v2026, %v2030
        %v2035 = vand.u32 2147483647, %v1984
        %vm2036 = vcmp.eq.f32.partialorder %v2035, 8.507059e+37
        %v2037 = vand.u32 %v1984, 2147483648
        %v2038 = vor.u32 1.1754944e-38, %v2037
        %v2039 = vsel %vm2036, %v2038, %v2034
        %v2040 = vrcp.pop %v1985
        %v2041 = vmul.f32 %v1985, %v2040
        %v2042 = vsub.f32 1.0, %v2041
        %v2043 = vmul.f32 %v2040, %v2042
        %v2044 = vadd.f32 %v2040, %v2043
        %vm2045 = vweird.f32 %v1985
        %vm2046 = vweird.f32 %v2040
        %vm2047 = vmor %vm2045, %vm2046
        %v2048 = vsel %vm2047, %v2040, %v2044
        %v2049 = vand.u32 2147483647, %v1985
        %vm2050 = vcmp.eq.f32.partialorder %v2049, 8.507059e+37
        %v2051 = vand.u32 %v1985, 2147483648
        %v2052 = vor.u32 1.1754944e-38, %v2051
        %v2053 = vsel %vm2050, %v2052, %v2048
        %v2054 = vrcp.pop %v1986
        %v2055 = vmul.f32 %v1986, %v2054
        %v2056 = vsub.f32 1.0, %v2055
        %v2057 = vmul.f32 %v2054, %v2056
        %v2058 = vadd.f32 %v2054, %v2057
        %vm2059 = vweird.f32 %v1986
        %vm2060 = vweird.f32 %v2054
        %vm2061 = vmor %vm2059, %vm2060
        %v2062 = vsel %vm2061, %v2054, %v2058
        %v2063 = vand.u32 2147483647, %v1986
        %vm2064 = vcmp.eq.f32.partialorder %v2063, 8.507059e+37
        %v2065 = vand.u32 %v1986, 2147483648
        %v2066 = vor.u32 1.1754944e-38, %v2065
        %v2067 = vsel %vm2064, %v2066, %v2062
        %v2068 = vrcp.pop %v1987
        %v2069 = vmul.f32 %v1987, %v2068
        %v2070 = vsub.f32 1.0, %v2069
        %v2071 = vmul.f32 %v2068, %v2070
        %v2072 = vadd.f32 %v2068, %v2071
        %vm2073 = vweird.f32 %v1987
        %vm2074 = vweird.f32 %v2068
        %vm2075 = vmor %vm2073, %vm2074
        %v2076 = vsel %vm2075, %v2068, %v2072
        %v2077 = vand.u32 2147483647, %v1987
        %vm2078 = vcmp.eq.f32.partialorder %v2077, 8.507059e+37
        %v2079 = vand.u32 %v1987, 2147483648
        %v2080 = vor.u32 1.1754944e-38, %v2079
        %v2081 = vsel %vm2078, %v2080, %v2076
        %v2082 = vrcp.pop %v1988
        %v2083 = vmul.f32 %v1988, %v2082
        %v2084 = vsub.f32 1.0, %v2083
        %v2085 = vmul.f32 %v2082, %v2084
        %v2086 = vadd.f32 %v2082, %v2085
        %vm2087 = vweird.f32 %v1988
        %vm2088 = vweird.f32 %v2082
        %vm2089 = vmor %vm2087, %vm2088
        %v2090 = vsel %vm2089, %v2082, %v2086
        %v2091 = vand.u32 2147483647, %v1988
        %vm2092 = vcmp.eq.f32.partialorder %v2091, 8.507059e+37
        %v2093 = vand.u32 %v1988, 2147483648
        %v2094 = vor.u32 1.1754944e-38, %v2093
        %v2095 = vsel %vm2092, %v2094, %v2090
        %v2096 = vrcp.pop %v1989
        %v2097 = vmul.f32 %v1989, %v2096
        %v2098 = vsub.f32 1.0, %v2097
        %v2099 = vmul.f32 %v2096, %v2098
        %v2100 = vadd.f32 %v2096, %v2099
        %vm2101 = vweird.f32 %v1989
        %vm2102 = vweird.f32 %v2096
        %vm2103 = vmor %vm2101, %vm2102
        %v2104 = vsel %vm2103, %v2096, %v2100
        %v2105 = vand.u32 2147483647, %v1989
        %vm2106 = vcmp.eq.f32.partialorder %v2105, 8.507059e+37
        %v2107 = vand.u32 %v1989, 2147483648
        %v2108 = vor.u32 1.1754944e-38, %v2107
        %v2109 = vsel %vm2106, %v2108, %v2104
        %v2110 = vrcp.pop %v1990
        %v2111 = vmul.f32 %v1990, %v2110
        %v2112 = vsub.f32 1.0, %v2111
        %v2113 = vmul.f32 %v2110, %v2112
        %v2114 = vadd.f32 %v2110, %v2113
        %vm2115 = vweird.f32 %v1990
        %vm2116 = vweird.f32 %v2110
        %vm2117 = vmor %vm2115, %vm2116
        %v2118 = vsel %vm2117, %v2110, %v2114
        %v2119 = vand.u32 2147483647, %v1990
        %vm2120 = vcmp.eq.f32.partialorder %v2119, 8.507059e+37
        %v2121 = vand.u32 %v1990, 2147483648
        %v2122 = vor.u32 1.1754944e-38, %v2121
        %v2123 = vsel %vm2120, %v2122, %v2118
        %v2124 = vrcp.pop %v1991
        %v2125 = vmul.f32 %v1991, %v2124
        %v2126 = vsub.f32 1.0, %v2125
        %v2127 = vmul.f32 %v2124, %v2126
        %v2128 = vadd.f32 %v2124, %v2127
        %vm2129 = vweird.f32 %v1991
        %vm2130 = vweird.f32 %v2124
        %vm2131 = vmor %vm2129, %vm2130
        %v2132 = vsel %vm2131, %v2124, %v2128
        %v2133 = vand.u32 2147483647, %v1991
        %vm2134 = vcmp.eq.f32.partialorder %v2133, 8.507059e+37
        %v2135 = vand.u32 %v1991, 2147483648
        %v2136 = vor.u32 1.1754944e-38, %v2135
        %v2137 = vsel %vm2134, %v2136, %v2132
        %v2138 = vrcp.pop %v1992
        %v2139 = vmul.f32 %v1992, %v2138
        %v2140 = vsub.f32 1.0, %v2139
        %v2141 = vmul.f32 %v2138, %v2140
        %v2142 = vadd.f32 %v2138, %v2141
        %vm2143 = vweird.f32 %v1992
        %vm2144 = vweird.f32 %v2138
        %vm2145 = vmor %vm2143, %vm2144
        %v2146 = vsel %vm2145, %v2138, %v2142
        %v2147 = vand.u32 2147483647, %v1992
        %vm2148 = vcmp.eq.f32.partialorder %v2147, 8.507059e+37
        %v2149 = vand.u32 %v1992, 2147483648
        %v2150 = vor.u32 1.1754944e-38, %v2149
        %v2151 = vsel %vm2148, %v2150, %v2146
        %v2152 = vrcp.pop %v1993
        %v2153 = vmul.f32 %v1993, %v2152
        %v2154 = vsub.f32 1.0, %v2153
        %v2155 = vmul.f32 %v2152, %v2154
        %v2156 = vadd.f32 %v2152, %v2155
        %vm2157 = vweird.f32 %v1993
        %vm2158 = vweird.f32 %v2152
        %vm2159 = vmor %vm2157, %vm2158
        %v2160 = vsel %vm2159, %v2152, %v2156
        %v2161 = vand.u32 2147483647, %v1993
        %vm2162 = vcmp.eq.f32.partialorder %v2161, 8.507059e+37
        %v2163 = vand.u32 %v1993, 2147483648
        %v2164 = vor.u32 1.1754944e-38, %v2163
        %v2165 = vsel %vm2162, %v2164, %v2160
        %v2166 = vrcp.pop %v1994
        %v2167 = vmul.f32 %v1994, %v2166
        %v2168 = vsub.f32 1.0, %v2167
        %v2169 = vmul.f32 %v2166, %v2168
        %v2170 = vadd.f32 %v2166, %v2169
        %vm2171 = vweird.f32 %v1994
        %vm2172 = vweird.f32 %v2166
        %vm2173 = vmor %vm2171, %vm2172
        %v2174 = vsel %vm2173, %v2166, %v2170
        %v2175 = vand.u32 2147483647, %v1994
        %vm2176 = vcmp.eq.f32.partialorder %v2175, 8.507059e+37
        %v2177 = vand.u32 %v1994, 2147483648
        %v2178 = vor.u32 1.1754944e-38, %v2177
        %v2179 = vsel %vm2176, %v2178, %v2174
        %v2180 = vrcp.pop %v1995
        %v2181 = vmul.f32 %v1995, %v2180
        %v2182 = vsub.f32 1.0, %v2181
        %v2183 = vmul.f32 %v2180, %v2182
        %v2184 = vadd.f32 %v2180, %v2183
        %vm2185 = vweird.f32 %v1995
        %vm2186 = vweird.f32 %v2180
        %vm2187 = vmor %vm2185, %vm2186
        %v2188 = vsel %vm2187, %v2180, %v2184
        %v2189 = vand.u32 2147483647, %v1995
        %vm2190 = vcmp.eq.f32.partialorder %v2189, 8.507059e+37
        %v2191 = vand.u32 %v1995, 2147483648
        %v2192 = vor.u32 1.1754944e-38, %v2191
        %v2193 = vsel %vm2190, %v2192, %v2188
        %v2194 = vrcp.pop %v1996
        %v2195 = vmul.f32 %v1996, %v2194
        %v2196 = vsub.f32 1.0, %v2195
        %v2197 = vmul.f32 %v2194, %v2196
        %v2198 = vadd.f32 %v2194, %v2197
        %vm2199 = vweird.f32 %v1996
        %vm2200 = vweird.f32 %v2194
        %vm2201 = vmor %vm2199, %vm2200
        %v2202 = vsel %vm2201, %v2194, %v2198
        %v2203 = vand.u32 2147483647, %v1996
        %vm2204 = vcmp.eq.f32.partialorder %v2203, 8.507059e+37
        %v2205 = vand.u32 %v1996, 2147483648
        %v2206 = vor.u32 1.1754944e-38, %v2205
        %v2207 = vsel %vm2204, %v2206, %v2202
        %v2208 = vrcp.pop %v1997
        %v2209 = vmul.f32 %v1997, %v2208
        %v2210 = vsub.f32 1.0, %v2209
        %v2211 = vmul.f32 %v2208, %v2210
        %v2212 = vadd.f32 %v2208, %v2211
        %vm2213 = vweird.f32 %v1997
        %vm2214 = vweird.f32 %v2208
        %vm2215 = vmor %vm2213, %vm2214
        %v2216 = vsel %vm2215, %v2208, %v2212
        %v2217 = vand.u32 2147483647, %v1997
        %vm2218 = vcmp.eq.f32.partialorder %v2217, 8.507059e+37
        %v2219 = vand.u32 %v1997, 2147483648
        %v2220 = vor.u32 1.1754944e-38, %v2219
        %v2221 = vsel %vm2218, %v2220, %v2216
        %v2222 = vmul.f32 %v1966, %v2011
        %v2223 = vmul.f32 %v1967, %v2025
        %v2224 = vmul.f32 %v1968, %v2039
        %v2225 = vmul.f32 %v1969, %v2053
        %v2226 = vmul.f32 %v1970, %v2067
        %v2227 = vmul.f32 %v1971, %v2081
        %v2228 = vmul.f32 %v1972, %v2095
        %v2229 = vmul.f32 %v1973, %v2109
        %v2230 = vmul.f32 %v1974, %v2123
        %v2231 = vmul.f32 %v1975, %v2137
        %v2232 = vmul.f32 %v1976, %v2151
        %v2233 = vmul.f32 %v1977, %v2165
        %v2234 = vmul.f32 %v1978, %v2179
        %v2235 = vmul.f32 %v1979, %v2193
        %v2236 = vmul.f32 %v1980, %v2207
        %v2237 = vmul.f32 %v1981, %v2221
        %vm2238 = vcmp.gt.f32.partialorder %v1871, 30.0
        %vm2239 = vcmp.gt.f32.partialorder %v1874, 30.0
        %vm2240 = vcmp.gt.f32.partialorder %v1877, 30.0
        %vm2241 = vcmp.gt.f32.partialorder %v1880, 30.0
        %vm2242 = vcmp.gt.f32.partialorder %v1883, 30.0
        %vm2243 = vcmp.gt.f32.partialorder %v1886, 30.0
        %vm2244 = vcmp.gt.f32.partialorder %v1889, 30.0
        %vm2245 = vcmp.gt.f32.partialorder %v1892, 30.0
        %vm2246 = vcmp.gt.f32.partialorder %v1895, 30.0
        %vm2247 = vcmp.gt.f32.partialorder %v1898, 30.0
        %vm2248 = vcmp.gt.f32.partialorder %v1901, 30.0
        %vm2249 = vcmp.gt.f32.partialorder %v1904, 30.0
        %vm2250 = vcmp.gt.f32.partialorder %v1907, 30.0
        %vm2251 = vcmp.gt.f32.partialorder %v1910, 30.0
        %vm2252 = vcmp.gt.f32.partialorder %v1913, 30.0
        %vm2253 = vcmp.gt.f32.partialorder %v1916, 30.0
        %v2254 = vsel %vm2238, 1.0, %v2222
        %v2255 = vsel %vm2239, 1.0, %v2223
        %v2256 = vsel %vm2240, 1.0, %v2224
        %v2257 = vsel %vm2241, 1.0, %v2225
        %v2258 = vsel %vm2242, 1.0, %v2226
        %v2259 = vsel %vm2243, 1.0, %v2227
        %v2260 = vsel %vm2244, 1.0, %v2228
        %v2261 = vsel %vm2245, 1.0, %v2229
        %v2262 = vsel %vm2246, 1.0, %v2230
        %v2263 = vsel %vm2247, 1.0, %v2231
        %v2264 = vsel %vm2248, 1.0, %v2232
        %v2265 = vsel %vm2249, 1.0, %v2233
        %v2266 = vsel %vm2250, 1.0, %v2234
        %v2267 = vsel %vm2251, 1.0, %v2235
        %v2268 = vsel %vm2252, 1.0, %v2236
        %v2269 = vsel %vm2253, 1.0, %v2237
        %v2270 = vmul.f32 %v1871, %v2254
        %v2271 = vmul.f32 %v1874, %v2255
        %v2272 = vmul.f32 %v1877, %v2256
        %v2273 = vmul.f32 %v1880, %v2257
        %v2274 = vmul.f32 %v1883, %v2258
        %v2275 = vmul.f32 %v1886, %v2259
        %v2276 = vmul.f32 %v1889, %v2260
        %v2277 = vmul.f32 %v1892, %v2261
        %v2278 = vmul.f32 %v1895, %v2262
        %v2279 = vmul.f32 %v1898, %v2263
        %v2280 = vmul.f32 %v1901, %v2264
        %v2281 = vmul.f32 %v1904, %v2265
        %v2282 = vmul.f32 %v1907, %v2266
        %v2283 = vmul.f32 %v1910, %v2267
        %v2284 = vmul.f32 %v1913, %v2268
        %v2285 = vmul.f32 %v1916, %v2269
        %v2286 = vld [vmem:[%s7] sm:$0xff]
        %v2287 = vld [vmem:[%s7 + $0x8] sm:$0xff]
        %v2288 = vld [vmem:[%s7 + $0x10] sm:$0xff]
        %v2289 = vld [vmem:[%s7 + $0x18] sm:$0xff]
        %v2290 = vld [vmem:[%s7 + $0x20] sm:$0xff]
        %v2291 = vld [vmem:[%s7 + $0x28] sm:$0xff]
        %v2292 = vld [vmem:[%s7 + $0x30] sm:$0xff]
        %v2293 = vld [vmem:[%s7 + $0x38] sm:$0xff]
        %v2294 = vld [vmem:[%s8] sm:$0x1]
        %v2296 = vperm.slane %v2294, 0
        %vm2298 = vcmask 523264
        %v2300 = vsel %vm2298, %v2270, 0
        %v2303 = vsel %vm2298, %v2271, 0
        %v2306 = vsel %vm2298, %v2272, 0
        %v2309 = vsel %vm2298, %v2273, 0
        %v2312 = vsel %vm2298, %v2274, 0
        %v2315 = vsel %vm2298, %v2275, 0
        %v2318 = vsel %vm2298, %v2276, 0
        %v2321 = vsel %vm2298, %v2277, 0
        %v2324 = vsel %vm2298, %v2278, 0
        %v2327 = vsel %vm2298, %v2279, 0
        %v2330 = vsel %vm2298, %v2280, 0
        %v2333 = vsel %vm2298, %v2281, 0
        %v2336 = vsel %vm2298, %v2282, 0
        %v2339 = vsel %vm2298, %v2283, 0
        %v2342 = vsel %vm2298, %v2284, 0
        %v2345 = vsel %vm2298, %v2285, 0
        %2347 = vmatpush.msra.mxu0 0.0
        %2348 = vmatpush.msra.mxu0 0.0
        %2349 = vmatpush.msra.mxu0 0.0
        %2350 = vmatpush.msra.mxu0 0.0
        %2351 = vmatpush.msra.mxu0 0.0
        %2352 = vmatpush.msra.mxu0 0.0
        %2353 = vmatpush.msra.mxu0 0.0
        %2354 = vmatpush.msra.mxu0 0.0
        %2355 = vmatpush.msra.mxu0 %v2293
        %2356 = vmatpush.msra.mxu0 %v2292
        %2357 = vmatpush.msra.mxu0 %v2291
        %2358 = vmatpush.msra.mxu0 %v2290
        %2359 = vmatpush.msra.mxu0 %v2289
        %2360 = vmatpush.msra.mxu0 %v2288
        %2361 = vmatpush.msra.mxu0 %v2287
        %2362 = vmatpush.msra.mxu0 %v2286
        %2363 = vmatmul.f32.gmra.mxu0 %v2300
        %v2364 = vpop.f32.mrf.mxu0
        %v2365 = vadd.f32 %v2296, %v2364
        %2366 = vmatmul.f32.gmra.mxu0 %v2303
        %v2367 = vpop.f32.mrf.mxu0
        %v2368 = vadd.f32 %v2296, %v2367
        %2369 = vmatmul.f32.gmra.mxu0 %v2306
        %v2370 = vpop.f32.mrf.mxu0
        %v2371 = vadd.f32 %v2296, %v2370
        %2372 = vmatmul.f32.gmra.mxu0 %v2309
        %v2373 = vpop.f32.mrf.mxu0
        %v2374 = vadd.f32 %v2296, %v2373
        %2375 = vmatmul.f32.gmra.mxu0 %v2312
        %v2376 = vpop.f32.mrf.mxu0
        %v2377 = vadd.f32 %v2296, %v2376
        %2378 = vmatmul.f32.gmra.mxu0 %v2315
        %v2379 = vpop.f32.mrf.mxu0
        %v2380 = vadd.f32 %v2296, %v2379
        %2381 = vmatmul.f32.gmra.mxu0 %v2318
        %v2382 = vpop.f32.mrf.mxu0
        %v2383 = vadd.f32 %v2296, %v2382
        %2384 = vmatmul.f32.gmra.mxu0 %v2321
        %v2385 = vpop.f32.mrf.mxu0
        %v2386 = vadd.f32 %v2296, %v2385
        %2387 = vmatmul.f32.gmra.mxu0 %v2324
        %v2388 = vpop.f32.mrf.mxu0
        %v2389 = vadd.f32 %v2296, %v2388
        %2390 = vmatmul.f32.gmra.mxu0 %v2327
        %v2391 = vpop.f32.mrf.mxu0
        %v2392 = vadd.f32 %v2296, %v2391
        %2393 = vmatmul.f32.gmra.mxu0 %v2330
        %v2394 = vpop.f32.mrf.mxu0
        %v2395 = vadd.f32 %v2296, %v2394
        %2396 = vmatmul.f32.gmra.mxu0 %v2333
        %v2397 = vpop.f32.mrf.mxu0
        %v2398 = vadd.f32 %v2296, %v2397
        %2399 = vmatmul.f32.gmra.mxu0 %v2336
        %v2400 = vpop.f32.mrf.mxu0
        %v2401 = vadd.f32 %v2296, %v2400
        %2402 = vmatmul.f32.gmra.mxu0 %v2339
        %v2403 = vpop.f32.mrf.mxu0
        %v2404 = vadd.f32 %v2296, %v2403
        %2405 = vmatmul.f32.gmra.mxu0 %v2342
        %v2406 = vpop.f32.mrf.mxu0
        %v2407 = vadd.f32 %v2296, %v2406
        %2408 = vmatmul.f32.gmra.mxu0 %v2345
        %v2409 = vpop.f32.mrf.mxu0
        %v2410 = vadd.f32 %v2296, %v2409
        %2411 = vdwg.mxu0
        %v2412 = vtanh.pop %v2365
        %v2413 = vtanh.pop %v2368
        %v2414 = vtanh.pop %v2371
        %v2415 = vtanh.pop %v2374
        %v2416 = vtanh.pop %v2377
        %v2417 = vtanh.pop %v2380
        %v2418 = vtanh.pop %v2383
        %v2419 = vtanh.pop %v2386
        %v2420 = vtanh.pop %v2389
        %v2421 = vtanh.pop %v2392
        %v2422 = vtanh.pop %v2395
        %v2423 = vtanh.pop %v2398
        %v2424 = vtanh.pop %v2401
        %v2425 = vtanh.pop %v2404
        %v2426 = vtanh.pop %v2407
        %v2427 = vtanh.pop %v2410
        %vm2428 = vcmask 31744
        %2429 = vst.msk [vmem:[%s334] sm:$0xff] %vm2428, %v2412
        %2430 = vst.msk [vmem:[%s334 + $0x8] sm:$0xff] %vm2428, %v2413
        %2431 = vst.msk [vmem:[%s334 + $0x10] sm:$0xff] %vm2428, %v2414
        %2432 = vst.msk [vmem:[%s334 + $0x18] sm:$0xff] %vm2428, %v2415
        %2433 = vst.msk [vmem:[%s334 + $0x20] sm:$0xff] %vm2428, %v2416
        %2434 = vst.msk [vmem:[%s334 + $0x28] sm:$0xff] %vm2428, %v2417
        %2435 = vst.msk [vmem:[%s334 + $0x30] sm:$0xff] %vm2428, %v2418
        %2436 = vst.msk [vmem:[%s334 + $0x38] sm:$0xff] %vm2428, %v2419
        %2437 = vst.msk [vmem:[%s334 + $0x40] sm:$0xff] %vm2428, %v2420
        %2438 = vst.msk [vmem:[%s334 + $0x48] sm:$0xff] %vm2428, %v2421
        %2439 = vst.msk [vmem:[%s334 + $0x50] sm:$0xff] %vm2428, %v2422
        %2440 = vst.msk [vmem:[%s334 + $0x58] sm:$0xff] %vm2428, %v2423
        %2441 = vst.msk [vmem:[%s334 + $0x60] sm:$0xff] %vm2428, %v2424
        %2442 = vst.msk [vmem:[%s334 + $0x68] sm:$0xff] %vm2428, %v2425
        %2443 = vst.msk [vmem:[%s334 + $0x70] sm:$0xff] %vm2428, %v2426
        %2444 = vst.msk [vmem:[%s334 + $0x78] sm:$0xff] %vm2428, %v2427
        %s2445 = sand.u32 %s222, 1
        %s2446 = sand.u32 %s222, 1
        %s2447 = smul.addr %s2446, 128
        %s2448 = scalar_lea.vmem [#allocation2], %s2447
        // Predicated region
        $region57: #{acceleration_network_forward.1} parent=55 // pred_check
          %p2449 = pneg %p232
        $region58: #{acceleration_network_forward.1} parent=55 // pred_check_branch
          %2451 = sbr.rel (%p2449) target = $region60
        $region59: #{acceleration_network_forward.1} parent=55 // pred_region
          %s2452 = smul.u32 16, %s20
          %s2453 = ssub.s32 25, %s2452
          %p2454 = scmp.lt.s32.totalorder %s2453, 16
          %s2455 = scalar_select %p2454, %s2453, 16
          %s2456 = smul.u32 8, %s2455
          %p2457 = scmp.ne.s32.totalorder 0, %s2456
          %s2458 = smul.addr %s2452, 8
          %s2459 = scalar_lea.vmem %s9, %s2458
          // Predicated region
          $region61: #{acceleration_network_forward.1} parent=59 // pred_check
            %p2460 = pneg %p2457
          $region62: #{acceleration_network_forward.1} parent=59 // pred_check_branch
            %2462 = sbr.rel (%p2460) target = $region64
          $region63: #{acceleration_network_forward.1} parent=59 // pred_region
            // Predicated region
            $region65: #{acceleration_network_forward.1} parent=63 // pred_check
              _
            $region66: #{acceleration_network_forward.1} parent=63 // pred_check_branch
              %2464 = sbr.rel (0) target = $region68
            $region67: #{acceleration_network_forward.1} parent=63 // pred_region
              // Predicated region
              $region87: #{acceleration_network_forward.1} parent=67 // pred_check
                _
              $region88: #{acceleration_network_forward.1} parent=67 // pred_check_branch
                %2544 = sbr.rel (0) target = $region90
              $region89: #{acceleration_network_forward.1} parent=67 // pred_region
                %s2545 = sshrl.u32 %s2455, 4
                // While loop
                $region91: #{acceleration_network_forward.1} parent=89 // loop_pre_header
                  _
                $region92: #{acceleration_network_forward.1} parent=89 // loop_header
                  %s2547 = sphi 0, %s2549
                  %p2548 = scmp.ge.s32.totalorder %s2547, %s2545
                  %s2552 = sphi 0, %s2589
                  %s2553 = sphi %s2448, %s2592
                  %s2554 = sphi %s2459, %s2593
                $region93: #{acceleration_network_forward.1} parent=89 // loop_header_branch
                  %2551 = sbr.rel (%p2548) target = $region97
                $region94: #{acceleration_network_forward.1} parent=89 // loop_body
                  %v2555 = vld [vmem:[%s2553] sm:$0xff]
                  %2556 = vst [vmem:[%s2554] sm:$0xff] %v2555
                  %v2557 = vld [vmem:[%s2553 + $0x8] sm:$0xff]
                  %2558 = vst [vmem:[%s2554 + $0x8] sm:$0xff] %v2557
                  %v2559 = vld [vmem:[%s2553 + $0x10] sm:$0xff]
                  %2560 = vst [vmem:[%s2554 + $0x10] sm:$0xff] %v2559
                  %v2561 = vld [vmem:[%s2553 + $0x18] sm:$0xff]
                  %2562 = vst [vmem:[%s2554 + $0x18] sm:$0xff] %v2561
                  %v2563 = vld [vmem:[%s2553 + $0x20] sm:$0xff]
                  %2564 = vst [vmem:[%s2554 + $0x20] sm:$0xff] %v2563
                  %v2565 = vld [vmem:[%s2553 + $0x28] sm:$0xff]
                  %2566 = vst [vmem:[%s2554 + $0x28] sm:$0xff] %v2565
                  %v2567 = vld [vmem:[%s2553 + $0x30] sm:$0xff]
                  %2568 = vst [vmem:[%s2554 + $0x30] sm:$0xff] %v2567
                  %v2569 = vld [vmem:[%s2553 + $0x38] sm:$0xff]
                  %2570 = vst [vmem:[%s2554 + $0x38] sm:$0xff] %v2569
                  %v2571 = vld [vmem:[%s2553 + $0x40] sm:$0xff]
                  %2572 = vst [vmem:[%s2554 + $0x40] sm:$0xff] %v2571
                  %v2573 = vld [vmem:[%s2553 + $0x48] sm:$0xff]
                  %2574 = vst [vmem:[%s2554 + $0x48] sm:$0xff] %v2573
                  %v2575 = vld [vmem:[%s2553 + $0x50] sm:$0xff]
                  %2576 = vst [vmem:[%s2554 + $0x50] sm:$0xff] %v2575
                  %v2577 = vld [vmem:[%s2553 + $0x58] sm:$0xff]
                  %2578 = vst [vmem:[%s2554 + $0x58] sm:$0xff] %v2577
                  %v2579 = vld [vmem:[%s2553 + $0x60] sm:$0xff]
                  %2580 = vst [vmem:[%s2554 + $0x60] sm:$0xff] %v2579
                  %v2581 = vld [vmem:[%s2553 + $0x68] sm:$0xff]
                  %2582 = vst [vmem:[%s2554 + $0x68] sm:$0xff] %v2581
                  %v2583 = vld [vmem:[%s2553 + $0x70] sm:$0xff]
                  %2584 = vst [vmem:[%s2554 + $0x70] sm:$0xff] %v2583
                  %v2585 = vld [vmem:[%s2553 + $0x78] sm:$0xff]
                  %2586 = vst [vmem:[%s2554 + $0x78] sm:$0xff] %v2585
                  %s2587 = sadd.s32 1, %s2552
                  %p2588 = scmp.ge.s32.totalorder %s2587, %s2545
                  %s2589 = scalar_select %p2588, 0, %s2587
                  %s2590 = smul.u32 %s2589, 128
                  %s2591 = smul.u32 %s2589, 128
                  %s2592 = scalar_lea.vmem %s2448, %s2590 [#allocation2]
                  %s2593 = scalar_lea.vmem %s2459, %s2591
                $region95: #{acceleration_network_forward.1} parent=89 // loop_footer
                  %s2549 = sadd.s32 %s2547, 1
                $region96: #{acceleration_network_forward.1} parent=89 // loop_footer_branch
                  %2546 = sbr.rel target = $region92
                $region97: #{acceleration_network_forward.1} parent=89 // loop_exit
                  _
                %s2594 = sshrl.u32 %s2455, 4
                %s2595 = sand.u32 %s2455, 15
                %s2596 = smul.u32 %s2594, 16
                %s2597 = smul.u32 8, %s2596
                %s2598 = scalar_lea.vmem %s2448, %s2597 [#allocation2]
                %s2599 = smul.u32 8, %s2596
                %s2600 = scalar_lea.vmem %s2459, %s2599
                // While loop
                $region98: #{acceleration_network_forward.1} parent=89 // loop_pre_header
                  _
                $region99: #{acceleration_network_forward.1} parent=89 // loop_header
                  %s2602 = sphi 0, %s2604
                  %p2603 = scmp.ge.s32.totalorder %s2602, %s2595
                  %s2607 = sphi 0, %s2614
                  %s2608 = sphi %s2598, %s2617
                  %s2609 = sphi %s2600, %s2618
                $region100: #{acceleration_network_forward.1} parent=89 // loop_header_branch
                  %2606 = sbr.rel (%p2603) target = $region104
                $region101: #{acceleration_network_forward.1} parent=89 // loop_body
                  %v2610 = vld [vmem:[%s2608] sm:$0xff]
                  %2611 = vst [vmem:[%s2609] sm:$0xff] %v2610
                  %s2612 = sadd.s32 1, %s2607
                  %p2613 = scmp.ge.s32.totalorder %s2612, %s2595
                  %s2614 = scalar_select %p2613, 0, %s2612
                  %s2615 = smul.u32 %s2614, 8
                  %s2616 = smul.u32 %s2614, 8
                  %s2617 = scalar_lea.vmem %s2598, %s2615 [#allocation2]
                  %s2618 = scalar_lea.vmem %s2600, %s2616
                $region102: #{acceleration_network_forward.1} parent=89 // loop_footer
                  %s2604 = sadd.s32 %s2602, 1
                $region103: #{acceleration_network_forward.1} parent=89 // loop_footer_branch
                  %2601 = sbr.rel target = $region99
                $region104: #{acceleration_network_forward.1} parent=89 // loop_exit
                  _
              $region90: #{acceleration_network_forward.1} parent=67 // pred_fallthru
                _
              // Predicated region
              $region105: #{acceleration_network_forward.1} parent=67 // pred_check
                _
              $region106: #{acceleration_network_forward.1} parent=67 // pred_check_branch
                %2620 = sbr.rel target = $region108
              $region107: #{acceleration_network_forward.1} parent=67 // pred_region
                _
              $region108: #{acceleration_network_forward.1} parent=67 // pred_fallthru
                _
            $region68: #{acceleration_network_forward.1} parent=63 // pred_fallthru
              _
            // Predicated region
            $region69: #{acceleration_network_forward.1} parent=63 // pred_check
              _
            $region70: #{acceleration_network_forward.1} parent=63 // pred_check_branch
              %2466 = sbr.rel target = $region72
            $region71: #{acceleration_network_forward.1} parent=63 // pred_region
              %s2468 = ssub.s32 256, 1
              %s2469 = sshrl.u32 %s2455, 4
              // While loop
              $region73: #{acceleration_network_forward.1} parent=71 // loop_pre_header
                _
              $region74: #{acceleration_network_forward.1} parent=71 // loop_header
                %s2471 = sphi 0, %s2473
                %p2472 = scmp.ge.s32.totalorder %s2471, %s2469
                %s2476 = sphi 0, %s2513
                %s2477 = sphi %s2448, %s2516
                %s2478 = sphi %s2459, %s2517
              $region75: #{acceleration_network_forward.1} parent=71 // loop_header_branch
                %2475 = sbr.rel (%p2472) target = $region79
              $region76: #{acceleration_network_forward.1} parent=71 // loop_body
                %v2479 = vld [vmem:[%s2477] sm:%s2468]
                %2480 = vst [vmem:[%s2478] sm:%s2468] %v2479
                %v2481 = vld [vmem:[%s2477 + $0x8] sm:%s2468]
                %2482 = vst [vmem:[%s2478 + $0x8] sm:%s2468] %v2481
                %v2483 = vld [vmem:[%s2477 + $0x10] sm:%s2468]
                %2484 = vst [vmem:[%s2478 + $0x10] sm:%s2468] %v2483
                %v2485 = vld [vmem:[%s2477 + $0x18] sm:%s2468]
                %2486 = vst [vmem:[%s2478 + $0x18] sm:%s2468] %v2485
                %v2487 = vld [vmem:[%s2477 + $0x20] sm:%s2468]
                %2488 = vst [vmem:[%s2478 + $0x20] sm:%s2468] %v2487
                %v2489 = vld [vmem:[%s2477 + $0x28] sm:%s2468]
                %2490 = vst [vmem:[%s2478 + $0x28] sm:%s2468] %v2489
                %v2491 = vld [vmem:[%s2477 + $0x30] sm:%s2468]
                %2492 = vst [vmem:[%s2478 + $0x30] sm:%s2468] %v2491
                %v2493 = vld [vmem:[%s2477 + $0x38] sm:%s2468]
                %2494 = vst [vmem:[%s2478 + $0x38] sm:%s2468] %v2493
                %v2495 = vld [vmem:[%s2477 + $0x40] sm:%s2468]
                %2496 = vst [vmem:[%s2478 + $0x40] sm:%s2468] %v2495
                %v2497 = vld [vmem:[%s2477 + $0x48] sm:%s2468]
                %2498 = vst [vmem:[%s2478 + $0x48] sm:%s2468] %v2497
                %v2499 = vld [vmem:[%s2477 + $0x50] sm:%s2468]
                %2500 = vst [vmem:[%s2478 + $0x50] sm:%s2468] %v2499
                %v2501 = vld [vmem:[%s2477 + $0x58] sm:%s2468]
                %2502 = vst [vmem:[%s2478 + $0x58] sm:%s2468] %v2501
                %v2503 = vld [vmem:[%s2477 + $0x60] sm:%s2468]
                %2504 = vst [vmem:[%s2478 + $0x60] sm:%s2468] %v2503
                %v2505 = vld [vmem:[%s2477 + $0x68] sm:%s2468]
                %2506 = vst [vmem:[%s2478 + $0x68] sm:%s2468] %v2505
                %v2507 = vld [vmem:[%s2477 + $0x70] sm:%s2468]
                %2508 = vst [vmem:[%s2478 + $0x70] sm:%s2468] %v2507
                %v2509 = vld [vmem:[%s2477 + $0x78] sm:%s2468]
                %2510 = vst [vmem:[%s2478 + $0x78] sm:%s2468] %v2509
                %s2511 = sadd.s32 1, %s2476
                %p2512 = scmp.ge.s32.totalorder %s2511, %s2469
                %s2513 = scalar_select %p2512, 0, %s2511
                %s2514 = smul.u32 %s2513, 128
                %s2515 = smul.u32 %s2513, 128
                %s2516 = scalar_lea.vmem %s2448, %s2514 [#allocation2]
                %s2517 = scalar_lea.vmem %s2459, %s2515
              $region77: #{acceleration_network_forward.1} parent=71 // loop_footer
                %s2473 = sadd.s32 %s2471, 1
              $region78: #{acceleration_network_forward.1} parent=71 // loop_footer_branch
                %2470 = sbr.rel target = $region74
              $region79: #{acceleration_network_forward.1} parent=71 // loop_exit
                _
              %s2518 = sshrl.u32 %s2455, 4
              %s2519 = sand.u32 %s2455, 15
              %s2520 = smul.u32 %s2518, 16
              %s2521 = smul.u32 8, %s2520
              %s2522 = scalar_lea.vmem %s2448, %s2521 [#allocation2]
              %s2523 = smul.u32 8, %s2520
              %s2524 = scalar_lea.vmem %s2459, %s2523
              // While loop
              $region80: #{acceleration_network_forward.1} parent=71 // loop_pre_header
                _
              $region81: #{acceleration_network_forward.1} parent=71 // loop_header
                %s2526 = sphi 0, %s2528
                %p2527 = scmp.ge.s32.totalorder %s2526, %s2519
                %s2531 = sphi 0, %s2538
                %s2532 = sphi %s2522, %s2541
                %s2533 = sphi %s2524, %s2542
              $region82: #{acceleration_network_forward.1} parent=71 // loop_header_branch
                %2530 = sbr.rel (%p2527) target = $region86
              $region83: #{acceleration_network_forward.1} parent=71 // loop_body
                %v2534 = vld [vmem:[%s2532] sm:%s2468]
                %2535 = vst [vmem:[%s2533] sm:%s2468] %v2534
                %s2536 = sadd.s32 1, %s2531
                %p2537 = scmp.ge.s32.totalorder %s2536, %s2519
                %s2538 = scalar_select %p2537, 0, %s2536
                %s2539 = smul.u32 %s2538, 8
                %s2540 = smul.u32 %s2538, 8
                %s2541 = scalar_lea.vmem %s2522, %s2539 [#allocation2]
                %s2542 = scalar_lea.vmem %s2524, %s2540
              $region84: #{acceleration_network_forward.1} parent=71 // loop_footer
                %s2528 = sadd.s32 %s2526, 1
              $region85: #{acceleration_network_forward.1} parent=71 // loop_footer_branch
                %2525 = sbr.rel target = $region81
              $region86: #{acceleration_network_forward.1} parent=71 // loop_exit
                _
            $region72: #{acceleration_network_forward.1} parent=63 // pred_fallthru
              _
          $region64: #{acceleration_network_forward.1} parent=59 // pred_fallthru
            _
          %2621 = vnop
        $region60: #{acceleration_network_forward.1} parent=55 // pred_fallthru
          _
      $region56: #{acceleration_network_forward.1} parent=5 // pred_fallthru
        _
      %p2622 = scmp.le.s32.totalorder 2, %s15
      // Predicated region
      $region109: #{acceleration_network_forward.1} parent=5 // pred_check
        %p2623 = pneg %p2622
      $region110: #{acceleration_network_forward.1} parent=5 // pred_check_branch
        %2625 = sbr.rel (%p2623) target = $region112
      $region111: #{acceleration_network_forward.1} parent=5 // pred_region
        %s2626 = ssub.s32 %s15, 2
        // Predicated region
        $region113: #{acceleration_network_forward.1} parent=111 // pred_check
          %p2627 = pneg %p238
        $region114: #{acceleration_network_forward.1} parent=111 // pred_check_branch
          %2629 = sbr.rel (%p2627) target = $region116
        $region115: #{acceleration_network_forward.1} parent=111 // pred_region
          %s2630 = sand.u32 %s223, 1
          %s2631 = sand.u32 %s223, 1
          %s2632 = smul.addr %s2631, 128
          %s2633 = scalar_lea.vmem [#allocation2], %s2632
        $region116: #{acceleration_network_forward.1} parent=111 // pred_fallthru
          _
      $region112: #{acceleration_network_forward.1} parent=5 // pred_fallthru
        _
    $region6: #{acceleration_network_forward.1} parent=1 // loop_footer
      %s19 = sadd.s32 1, %s15
    $region7: #{acceleration_network_forward.1} parent=1 // loop_footer_branch
      %14 = sbr.rel target = $region3
    $region8: #{acceleration_network_forward.1} parent=1 // loop_exit
      _

</llo_original>
